<compile_context>
chip_gen: v7x
topology: tpu7x:2x2x1
jax: 0.10.0
libtpu: 0.0.40
codegen_flags: <defaults>
</compile_context>

<pallas_src>
import jax
import jax.numpy as jnp
from jax import lax
from jax.experimental import pallas as pl
from jax.experimental.pallas import tpu as pltpu


def combo_kernel(x_ref, wih_ref, whh_ref, b_ref,
                 wat_ref, bat_ref, v_ref, bv_ref, oneh_ref,
                 out_ref, hn_ref, cn_ref):
    B, H = hn_ref.shape
    TB = x_ref.shape[0]
    T = TB // B

    # ---- hoisted input projection: one batched bf16 matmul (off the chain) --
    pre = (jnp.dot(x_ref[...], wih_ref[...],
                   preferred_element_type=jnp.float32)
           + b_ref[...])                                          # (T*B, 4H) f32

    whh = whh_ref[...]                                            # (H, 4H) bf16

    # ---- serial recurrence: only h @ W_hh + one tanh (+ tanh(c)) per step ---
    h = jnp.zeros((B, H), jnp.float32)
    c = jnp.zeros((B, H), jnp.float32)
    hs = []
    for t in range(T):                       # static unroll, aligned slices
        g_pre = pre[t * B:(t + 1) * B, :]    # (B, 4H) — whole-vreg slice (B=8)
        if t == 0:
            gates = g_pre                    # h0 == 0: skip the matmul
        else:
            gates = (jnp.dot(h.astype(jnp.bfloat16), whh,
                             preferred_element_type=jnp.float32) + g_pre)
        th = jnp.tanh(gates)                 # single full-width EUP op
        # i/f/o pre-activations were pre-scaled by 0.5 in the wrapper, so
        # sigmoid(z) == 0.5 * tanh(z/2) + 0.5 is exact here.
        i_g = 0.5 * th[:, 0 * H:1 * H] + 0.5
        f_g = 0.5 * th[:, 1 * H:2 * H] + 0.5
        g_g = th[:, 2 * H:3 * H]
        o_g = 0.5 * th[:, 3 * H:4 * H] + 0.5
        c = f_g * c + i_g * g_g
        h = o_g * jnp.tanh(c)
        hs.append(h)
    hn_ref[...] = h
    cn_ref[...] = c

    seq = jnp.concatenate(hs, axis=0)                             # (T*B, H)

    # ---- attention epilogue (hoisted, off the chain, runs once) -------------
    inter = jnp.tanh(
        jnp.dot(seq, wat_ref[...], preferred_element_type=jnp.float32)
        + bat_ref[...])                                           # (T*B, U)
    # V(inter): VPU multiply + lane reduce (no 1-output-lane MXU matmul)
    score = jnp.sum(inter * v_ref[...], axis=-1, keepdims=True) + bv_ref[...]

    # softmax over the time axis, per batch, via a (T*B, B) one-hot segmented
    # reduce.  Rows are laid out r = t*B + b; oneh[r, b'] = (r % B == b').
    oneh = oneh_ref[...]                                          # (T*B, B) f32
    neg_big = jnp.float32(-1e30)
    grp_max = jnp.max(jnp.where(oneh > 0, score, neg_big),
                      axis=0, keepdims=True)                      # (1, B)
    row_max = jnp.sum(oneh * grp_max, axis=1, keepdims=True)      # (T*B, 1)
    e = jnp.exp(score - row_max)                                  # (T*B, 1)
    grp_den = jnp.sum(oneh * e, axis=0, keepdims=True)            # (1, B)
    row_den = jnp.sum(oneh * grp_den, axis=1, keepdims=True)      # (T*B, 1)
    out_ref[...] = seq * (e / row_den)                            # (T*B, H)


def combo_forward(x, params):
    T, B, D = x.shape
    H = params["whh_t"].shape[0]

    # Pre-scale i/f/o gate columns by 0.5 so the kernel needs only one tanh per
    # step (sigmoid(z) = 0.5*tanh(z/2) + 0.5).  PyTorch gate order: i, f, g, o.
    col_scale = jnp.concatenate(
        [jnp.full((1, H), 0.5, jnp.float32),
         jnp.full((1, H), 0.5, jnp.float32),
         jnp.ones((1, H), jnp.float32),
         jnp.full((1, H), 0.5, jnp.float32)], axis=1)             # (1, 4H)
    wih_s = (params["wih_t"] * col_scale).astype(jnp.bfloat16)    # (D, 4H)
    whh_s = (params["whh_t"] * col_scale).astype(jnp.bfloat16)    # (H, 4H)
    bias_s = params["bias"] * col_scale                           # (1, 4H) f32

    # IntraAttention: W1/W2 and b1/b2 both act on the same h -> fuse.
    w_attn = params["w1_t"] + params["w2_t"]                      # (H, U)
    b_attn = params["b1"] + params["b2"]                          # (1, U)
    v_row = params["v_t"].reshape(1, -1)                          # (1, U)

    x2 = x.reshape(T * B, D).astype(jnp.bfloat16)                 # (T*B, D)

    # one-hot "which batch" matrix for the per-batch softmax segmented reduce
    onehot = (jnp.arange(T * B, dtype=jnp.int32)[:, None] % B
              == jnp.arange(B, dtype=jnp.int32)[None, :]).astype(jnp.float32)

    vmem = lambda: pl.BlockSpec(memory_space=pltpu.MemorySpace.VMEM)
    out_shape = (jax.ShapeDtypeStruct((T * B, H), jnp.float32),
                 jax.ShapeDtypeStruct((B, H), jnp.float32),
                 jax.ShapeDtypeStruct((B, H), jnp.float32))
    out2, h_n, c_n = pl.pallas_call(
        combo_kernel,
        out_shape=out_shape,
        in_specs=[vmem() for _ in range(9)],
        out_specs=(vmem(), vmem(), vmem()),
    )(x2, wih_s, whh_s, bias_s, w_attn, b_attn, v_row, params["bv"], onehot)
    return out2.reshape(T, B, H), h_n[None], c_n[None]


def combo_ref(x, p):
    """Pure-JAX f32 reference matching PyTorch Combo.forward semantics."""
    _, B, _ = x.shape
    H = p["whh_t"].shape[0]

    def step(carry, x_t):
        h, c = carry
        gates = x_t @ p["wih_t"] + h @ p["whh_t"] + p["bias"]
        i = jax.nn.sigmoid(gates[:, :H])
        f = jax.nn.sigmoid(gates[:, H:2 * H])
        g = jnp.tanh(gates[:, 2 * H:3 * H])
        o = jax.nn.sigmoid(gates[:, 3 * H:])
        c = f * c + i * g
        h = o * jnp.tanh(c)
        return (h, c), h

    (h_fin, c_fin), seq = lax.scan(
        step, (jnp.zeros((B, H), jnp.float32), jnp.zeros((B, H), jnp.float32)), x)
    inter = jnp.tanh(seq @ p["w1_t"] + p["b1"] + seq @ p["w2_t"] + p["b2"])
    score = inter @ p["v_t"] + p["bv"]                            # (T, B, 1)
    wts = jax.nn.softmax(score, axis=0)
    return seq * wts, h_fin[None], c_fin[None]


def make_params(key, input_dim, hidden, units):
    ks = jax.random.split(key, 9)
    n = lambda k, shp: (0.1 * jax.random.normal(k, shp)).astype(jnp.float32)
    return {
        # LSTM: weight_ih (4H, D) / weight_hh (4H, H) pre-transposed; biases summed.
        "wih_t": n(ks[0], (input_dim, 4 * hidden)),
        "whh_t": n(ks[1], (hidden, 4 * hidden)),
        "bias":  n(ks[2], (1, 4 * hidden)) + n(ks[3], (1, 4 * hidden)),
        # IntraAttention: W1, W2 (units, H) pre-transposed; V (1, units) pre-transposed.
        "w1_t": n(ks[4], (hidden, units)),
        "b1":   n(ks[5], (1, units)),
        "w2_t": n(ks[6], (hidden, units)),
        "b2":   n(ks[7], (1, units)),
        "v_t":  n(ks[8], (units, 1)),
        "bv":   jnp.zeros((1, 1), jnp.float32),
    }


if __name__ == "__main__":
    # B=8 (up from 4, per review): fills sublanes and makes every per-step
    # slice (8, *)-aligned, at no extra per-step cost.
    T, B, D, H, U = 8, 8, 8, 32, 16   # seq_len, batch, input_dim, hidden, attn units
    key = jax.random.PRNGKey(0)
    k_x, k_p = jax.random.split(key)
    x = (0.5 * jax.random.normal(k_x, (T, B, D))).astype(jnp.float32)
    params = make_params(k_p, D, H, U)

    out, h_n, c_n = combo_forward(x, params)
    jax.block_until_ready((out, h_n, c_n))

    out_r, h_r, c_r = combo_ref(x, params)
    # Tolerance loosened vs. the all-f32 version: bf16 operands (f32 accumulate)
    # on x@W_ih and the 8-step h@W_hh recurrence introduce ~1e-3-scale error.
    assert jnp.allclose(out, out_r, rtol=1e-2, atol=1e-2)
    assert jnp.allclose(h_n, h_r, rtol=1e-2, atol=1e-2)
    assert jnp.allclose(c_n, c_r, rtol=1e-2, atol=1e-2)

    print("KERNEL_OK")
</pallas_src>

<mosaic_0001>
module attributes {stable_mosaic.version = 11 : i64} {
  func.func @combo_kernel(%arg0: memref<64x8xbf16, #tpu.memory_space<vmem>>, %arg1: memref<8x128xbf16, #tpu.memory_space<vmem>>, %arg2: memref<32x128xbf16, #tpu.memory_space<vmem>>, %arg3: memref<1x128xf32, #tpu.memory_space<vmem>>, %arg4: memref<32x16xf32, #tpu.memory_space<vmem>>, %arg5: memref<1x16xf32, #tpu.memory_space<vmem>>, %arg6: memref<1x16xf32, #tpu.memory_space<vmem>>, %arg7: memref<1x1xf32, #tpu.memory_space<vmem>>, %arg8: memref<64x8xf32, #tpu.memory_space<vmem>>, %arg9: memref<64x32xf32, #tpu.memory_space<vmem>>, %arg10: memref<8x32xf32, #tpu.memory_space<vmem>>, %arg11: memref<8x32xf32, #tpu.memory_space<vmem>>) attributes {dimension_semantics = [], scalar_prefetch = 0 : i64, scratch_operands = 0 : i64, tpu.core_type = #tpu.core_type<tc>} {
    %c0 = arith.constant 0 : index
    %c0_0 = arith.constant 0 : index
    %0 = vector.load %arg0[%c0, %c0_0] : memref<64x8xbf16, #tpu.memory_space<vmem>>, vector<64x8xbf16>
    %c0_1 = arith.constant 0 : index
    %c0_2 = arith.constant 0 : index
    %1 = vector.load %arg1[%c0_1, %c0_2] : memref<8x128xbf16, #tpu.memory_space<vmem>>, vector<8x128xbf16>
    %cst = arith.constant dense<0.000000e+00> : vector<64x128xf32>
    %2 = tpu.matmul %0, %1, %cst {dimension_numbers = #tpu.dot_dimension_numbers<[1], [0], [0], [1], [0, 0, 1, 1], [], []>} : vector<64x8xbf16>, vector<8x128xbf16>, vector<64x128xf32> -> vector<64x128xf32>
    %c0_3 = arith.constant 0 : index
    %c0_4 = arith.constant 0 : index
    %3 = vector.load %arg3[%c0_3, %c0_4] : memref<1x128xf32, #tpu.memory_space<vmem>>, vector<1x128xf32>
    %4 = vector.broadcast %3 : vector<1x128xf32> to vector<64x128xf32>
    %5 = arith.addf %2, %4 : vector<64x128xf32>
    %c0_5 = arith.constant 0 : index
    %c0_6 = arith.constant 0 : index
    %6 = vector.load %arg2[%c0_5, %c0_6] : memref<32x128xbf16, #tpu.memory_space<vmem>>, vector<32x128xbf16>
    %cst_7 = arith.constant 0.000000e+00 : f32
    %7 = vector.broadcast %cst_7 : f32 to vector<8x32xf32>
    %8 = vector.extract_strided_slice %5 {offsets = [0, 0], sizes = [8, 128], strides = [1, 1]} : vector<64x128xf32> to vector<8x128xf32>
    %9 = math.tanh %8 : vector<8x128xf32>
    %10 = vector.extract_strided_slice %9 {offsets = [0, 0], sizes = [8, 32], strides = [1, 1]} : vector<8x128xf32> to vector<8x32xf32>
    %cst_8 = arith.constant 5.000000e-01 : f32
    %11 = vector.broadcast %cst_8 : f32 to vector<8x32xf32>
    %12 = arith.mulf %11, %10 : vector<8x32xf32>
    %cst_9 = arith.constant 5.000000e-01 : f32
    %13 = vector.broadcast %cst_9 : f32 to vector<8x32xf32>
    %14 = arith.addf %12, %13 : vector<8x32xf32>
    %15 = vector.extract_strided_slice %9 {offsets = [0, 32], sizes = [8, 32], strides = [1, 1]} : vector<8x128xf32> to vector<8x32xf32>
    %cst_10 = arith.constant 5.000000e-01 : f32
    %16 = vector.broadcast %cst_10 : f32 to vector<8x32xf32>
    %17 = arith.mulf %16, %15 : vector<8x32xf32>
    %cst_11 = arith.constant 5.000000e-01 : f32
    %18 = vector.broadcast %cst_11 : f32 to vector<8x32xf32>
    %19 = arith.addf %17, %18 : vector<8x32xf32>
    %20 = vector.extract_strided_slice %9 {offsets = [0, 64], sizes = [8, 32], strides = [1, 1]} : vector<8x128xf32> to vector<8x32xf32>
    %21 = vector.extract_strided_slice %9 {offsets = [0, 96], sizes = [8, 32], strides = [1, 1]} : vector<8x128xf32> to vector<8x32xf32>
    %cst_12 = arith.constant 5.000000e-01 : f32
    %22 = vector.broadcast %cst_12 : f32 to vector<8x32xf32>
    %23 = arith.mulf %22, %21 : vector<8x32xf32>
    %cst_13 = arith.constant 5.000000e-01 : f32
    %24 = vector.broadcast %cst_13 : f32 to vector<8x32xf32>
    %25 = arith.addf %23, %24 : vector<8x32xf32>
    %26 = arith.mulf %19, %7 : vector<8x32xf32>
    %27 = arith.mulf %14, %20 : vector<8x32xf32>
    %28 = arith.addf %26, %27 : vector<8x32xf32>
    %29 = math.tanh %28 : vector<8x32xf32>
    %30 = arith.mulf %25, %29 : vector<8x32xf32>
    %31 = vector.extract_strided_slice %5 {offsets = [8, 0], sizes = [8, 128], strides = [1, 1]} : vector<64x128xf32> to vector<8x128xf32>
    %32 = arith.truncf %30 : vector<8x32xf32> to vector<8x32xbf16>
    %cst_14 = arith.constant dense<0.000000e+00> : vector<8x128xf32>
    %33 = tpu.matmul %32, %6, %cst_14 {dimension_numbers = #tpu.dot_dimension_numbers<[1], [0], [0], [1], [0, 0, 1, 1], [], []>} : vector<8x32xbf16>, vector<32x128xbf16>, vector<8x128xf32> -> vector<8x128xf32>
    %34 = arith.addf %33, %31 : vector<8x128xf32>
    %35 = math.tanh %34 : vector<8x128xf32>
    %36 = vector.extract_strided_slice %35 {offsets = [0, 0], sizes = [8, 32], strides = [1, 1]} : vector<8x128xf32> to vector<8x32xf32>
    %cst_15 = arith.constant 5.000000e-01 : f32
    %37 = vector.broadcast %cst_15 : f32 to vector<8x32xf32>
    %38 = arith.mulf %37, %36 : vector<8x32xf32>
    %cst_16 = arith.constant 5.000000e-01 : f32
    %39 = vector.broadcast %cst_16 : f32 to vector<8x32xf32>
    %40 = arith.addf %38, %39 : vector<8x32xf32>
    %41 = vector.extract_strided_slice %35 {offsets = [0, 32], sizes = [8, 32], strides = [1, 1]} : vector<8x128xf32> to vector<8x32xf32>
    %cst_17 = arith.constant 5.000000e-01 : f32
    %42 = vector.broadcast %cst_17 : f32 to vector<8x32xf32>
    %43 = arith.mulf %42, %41 : vector<8x32xf32>
    %cst_18 = arith.constant 5.000000e-01 : f32
    %44 = vector.broadcast %cst_18 : f32 to vector<8x32xf32>
    %45 = arith.addf %43, %44 : vector<8x32xf32>
    %46 = vector.extract_strided_slice %35 {offsets = [0, 64], sizes = [8, 32], strides = [1, 1]} : vector<8x128xf32> to vector<8x32xf32>
    %47 = vector.extract_strided_slice %35 {offsets = [0, 96], sizes = [8, 32], strides = [1, 1]} : vector<8x128xf32> to vector<8x32xf32>
    %cst_19 = arith.constant 5.000000e-01 : f32
    %48 = vector.broadcast %cst_19 : f32 to vector<8x32xf32>
    %49 = arith.mulf %48, %47 : vector<8x32xf32>
    %cst_20 = arith.constant 5.000000e-01 : f32
    %50 = vector.broadcast %cst_20 : f32 to vector<8x32xf32>
    %51 = arith.addf %49, %50 : vector<8x32xf32>
    %52 = arith.mulf %45, %28 : vector<8x32xf32>
    %53 = arith.mulf %40, %46 : vector<8x32xf32>
    %54 = arith.addf %52, %53 : vector<8x32xf32>
    %55 = math.tanh %54 : vector<8x32xf32>
    %56 = arith.mulf %51, %55 : vector<8x32xf32>
    %57 = vector.extract_strided_slice %5 {offsets = [16, 0], sizes = [8, 128], strides = [1, 1]} : vector<64x128xf32> to vector<8x128xf32>
    %58 = arith.truncf %56 : vector<8x32xf32> to vector<8x32xbf16>
    %cst_21 = arith.constant dense<0.000000e+00> : vector<8x128xf32>
    %59 = tpu.matmul %58, %6, %cst_21 {dimension_numbers = #tpu.dot_dimension_numbers<[1], [0], [0], [1], [0, 0, 1, 1], [], []>} : vector<8x32xbf16>, vector<32x128xbf16>, vector<8x128xf32> -> vector<8x128xf32>
    %60 = arith.addf %59, %57 : vector<8x128xf32>
    %61 = math.tanh %60 : vector<8x128xf32>
    %62 = vector.extract_strided_slice %61 {offsets = [0, 0], sizes = [8, 32], strides = [1, 1]} : vector<8x128xf32> to vector<8x32xf32>
    %cst_22 = arith.constant 5.000000e-01 : f32
    %63 = vector.broadcast %cst_22 : f32 to vector<8x32xf32>
    %64 = arith.mulf %63, %62 : vector<8x32xf32>
    %cst_23 = arith.constant 5.000000e-01 : f32
    %65 = vector.broadcast %cst_23 : f32 to vector<8x32xf32>
    %66 = arith.addf %64, %65 : vector<8x32xf32>
    %67 = vector.extract_strided_slice %61 {offsets = [0, 32], sizes = [8, 32], strides = [1, 1]} : vector<8x128xf32> to vector<8x32xf32>
    %cst_24 = arith.constant 5.000000e-01 : f32
    %68 = vector.broadcast %cst_24 : f32 to vector<8x32xf32>
    %69 = arith.mulf %68, %67 : vector<8x32xf32>
    %cst_25 = arith.constant 5.000000e-01 : f32
    %70 = vector.broadcast %cst_25 : f32 to vector<8x32xf32>
    %71 = arith.addf %69, %70 : vector<8x32xf32>
    %72 = vector.extract_strided_slice %61 {offsets = [0, 64], sizes = [8, 32], strides = [1, 1]} : vector<8x128xf32> to vector<8x32xf32>
    %73 = vector.extract_strided_slice %61 {offsets = [0, 96], sizes = [8, 32], strides = [1, 1]} : vector<8x128xf32> to vector<8x32xf32>
    %cst_26 = arith.constant 5.000000e-01 : f32
    %74 = vector.broadcast %cst_26 : f32 to vector<8x32xf32>
    %75 = arith.mulf %74, %73 : vector<8x32xf32>
    %cst_27 = arith.constant 5.000000e-01 : f32
    %76 = vector.broadcast %cst_27 : f32 to vector<8x32xf32>
    %77 = arith.addf %75, %76 : vector<8x32xf32>
    %78 = arith.mulf %71, %54 : vector<8x32xf32>
    %79 = arith.mulf %66, %72 : vector<8x32xf32>
    %80 = arith.addf %78, %79 : vector<8x32xf32>
    %81 = math.tanh %80 : vector<8x32xf32>
    %82 = arith.mulf %77, %81 : vector<8x32xf32>
    %83 = vector.extract_strided_slice %5 {offsets = [24, 0], sizes = [8, 128], strides = [1, 1]} : vector<64x128xf32> to vector<8x128xf32>
    %84 = arith.truncf %82 : vector<8x32xf32> to vector<8x32xbf16>
    %cst_28 = arith.constant dense<0.000000e+00> : vector<8x128xf32>
    %85 = tpu.matmul %84, %6, %cst_28 {dimension_numbers = #tpu.dot_dimension_numbers<[1], [0], [0], [1], [0, 0, 1, 1], [], []>} : vector<8x32xbf16>, vector<32x128xbf16>, vector<8x128xf32> -> vector<8x128xf32>
    %86 = arith.addf %85, %83 : vector<8x128xf32>
    %87 = math.tanh %86 : vector<8x128xf32>
    %88 = vector.extract_strided_slice %87 {offsets = [0, 0], sizes = [8, 32], strides = [1, 1]} : vector<8x128xf32> to vector<8x32xf32>
    %cst_29 = arith.constant 5.000000e-01 : f32
    %89 = vector.broadcast %cst_29 : f32 to vector<8x32xf32>
    %90 = arith.mulf %89, %88 : vector<8x32xf32>
    %cst_30 = arith.constant 5.000000e-01 : f32
    %91 = vector.broadcast %cst_30 : f32 to vector<8x32xf32>
    %92 = arith.addf %90, %91 : vector<8x32xf32>
    %93 = vector.extract_strided_slice %87 {offsets = [0, 32], sizes = [8, 32], strides = [1, 1]} : vector<8x128xf32> to vector<8x32xf32>
    %cst_31 = arith.constant 5.000000e-01 : f32
    %94 = vector.broadcast %cst_31 : f32 to vector<8x32xf32>
    %95 = arith.mulf %94, %93 : vector<8x32xf32>
    %cst_32 = arith.constant 5.000000e-01 : f32
    %96 = vector.broadcast %cst_32 : f32 to vector<8x32xf32>
    %97 = arith.addf %95, %96 : vector<8x32xf32>
    %98 = vector.extract_strided_slice %87 {offsets = [0, 64], sizes = [8, 32], strides = [1, 1]} : vector<8x128xf32> to vector<8x32xf32>
    %99 = vector.extract_strided_slice %87 {offsets = [0, 96], sizes = [8, 32], strides = [1, 1]} : vector<8x128xf32> to vector<8x32xf32>
    %cst_33 = arith.constant 5.000000e-01 : f32
    %100 = vector.broadcast %cst_33 : f32 to vector<8x32xf32>
    %101 = arith.mulf %100, %99 : vector<8x32xf32>
    %cst_34 = arith.constant 5.000000e-01 : f32
    %102 = vector.broadcast %cst_34 : f32 to vector<8x32xf32>
    %103 = arith.addf %101, %102 : vector<8x32xf32>
    %104 = arith.mulf %97, %80 : vector<8x32xf32>
    %105 = arith.mulf %92, %98 : vector<8x32xf32>
    %106 = arith.addf %104, %105 : vector<8x32xf32>
    %107 = math.tanh %106 : vector<8x32xf32>
    %108 = arith.mulf %103, %107 : vector<8x32xf32>
    %109 = vector.extract_strided_slice %5 {offsets = [32, 0], sizes = [8, 128], strides = [1, 1]} : vector<64x128xf32> to vector<8x128xf32>
    %110 = arith.truncf %108 : vector<8x32xf32> to vector<8x32xbf16>
    %cst_35 = arith.constant dense<0.000000e+00> : vector<8x128xf32>
    %111 = tpu.matmul %110, %6, %cst_35 {dimension_numbers = #tpu.dot_dimension_numbers<[1], [0], [0], [1], [0, 0, 1, 1], [], []>} : vector<8x32xbf16>, vector<32x128xbf16>, vector<8x128xf32> -> vector<8x128xf32>
    %112 = arith.addf %111, %109 : vector<8x128xf32>
    %113 = math.tanh %112 : vector<8x128xf32>
    %114 = vector.extract_strided_slice %113 {offsets = [0, 0], sizes = [8, 32], strides = [1, 1]} : vector<8x128xf32> to vector<8x32xf32>
    %cst_36 = arith.constant 5.000000e-01 : f32
    %115 = vector.broadcast %cst_36 : f32 to vector<8x32xf32>
    %116 = arith.mulf %115, %114 : vector<8x32xf32>
    %cst_37 = arith.constant 5.000000e-01 : f32
    %117 = vector.broadcast %cst_37 : f32 to vector<8x32xf32>
    %118 = arith.addf %116, %117 : vector<8x32xf32>
    %119 = vector.extract_strided_slice %113 {offsets = [0, 32], sizes = [8, 32], strides = [1, 1]} : vector<8x128xf32> to vector<8x32xf32>
    %cst_38 = arith.constant 5.000000e-01 : f32
    %120 = vector.broadcast %cst_38 : f32 to vector<8x32xf32>
    %121 = arith.mulf %120, %119 : vector<8x32xf32>
    %cst_39 = arith.constant 5.000000e-01 : f32
    %122 = vector.broadcast %cst_39 : f32 to vector<8x32xf32>
    %123 = arith.addf %121, %122 : vector<8x32xf32>
    %124 = vector.extract_strided_slice %113 {offsets = [0, 64], sizes = [8, 32], strides = [1, 1]} : vector<8x128xf32> to vector<8x32xf32>
    %125 = vector.extract_strided_slice %113 {offsets = [0, 96], sizes = [8, 32], strides = [1, 1]} : vector<8x128xf32> to vector<8x32xf32>
    %cst_40 = arith.constant 5.000000e-01 : f32
    %126 = vector.broadcast %cst_40 : f32 to vector<8x32xf32>
    %127 = arith.mulf %126, %125 : vector<8x32xf32>
    %cst_41 = arith.constant 5.000000e-01 : f32
    %128 = vector.broadcast %cst_41 : f32 to vector<8x32xf32>
    %129 = arith.addf %127, %128 : vector<8x32xf32>
    %130 = arith.mulf %123, %106 : vector<8x32xf32>
    %131 = arith.mulf %118, %124 : vector<8x32xf32>
    %132 = arith.addf %130, %131 : vector<8x32xf32>
    %133 = math.tanh %132 : vector<8x32xf32>
    %134 = arith.mulf %129, %133 : vector<8x32xf32>
    %135 = vector.extract_strided_slice %5 {offsets = [40, 0], sizes = [8, 128], strides = [1, 1]} : vector<64x128xf32> to vector<8x128xf32>
    %136 = arith.truncf %134 : vector<8x32xf32> to vector<8x32xbf16>
    %cst_42 = arith.constant dense<0.000000e+00> : vector<8x128xf32>
    %137 = tpu.matmul %136, %6, %cst_42 {dimension_numbers = #tpu.dot_dimension_numbers<[1], [0], [0], [1], [0, 0, 1, 1], [], []>} : vector<8x32xbf16>, vector<32x128xbf16>, vector<8x128xf32> -> vector<8x128xf32>
    %138 = arith.addf %137, %135 : vector<8x128xf32>
    %139 = math.tanh %138 : vector<8x128xf32>
    %140 = vector.extract_strided_slice %139 {offsets = [0, 0], sizes = [8, 32], strides = [1, 1]} : vector<8x128xf32> to vector<8x32xf32>
    %cst_43 = arith.constant 5.000000e-01 : f32
    %141 = vector.broadcast %cst_43 : f32 to vector<8x32xf32>
    %142 = arith.mulf %141, %140 : vector<8x32xf32>
    %cst_44 = arith.constant 5.000000e-01 : f32
    %143 = vector.broadcast %cst_44 : f32 to vector<8x32xf32>
    %144 = arith.addf %142, %143 : vector<8x32xf32>
    %145 = vector.extract_strided_slice %139 {offsets = [0, 32], sizes = [8, 32], strides = [1, 1]} : vector<8x128xf32> to vector<8x32xf32>
    %cst_45 = arith.constant 5.000000e-01 : f32
    %146 = vector.broadcast %cst_45 : f32 to vector<8x32xf32>
    %147 = arith.mulf %146, %145 : vector<8x32xf32>
    %cst_46 = arith.constant 5.000000e-01 : f32
    %148 = vector.broadcast %cst_46 : f32 to vector<8x32xf32>
    %149 = arith.addf %147, %148 : vector<8x32xf32>
    %150 = vector.extract_strided_slice %139 {offsets = [0, 64], sizes = [8, 32], strides = [1, 1]} : vector<8x128xf32> to vector<8x32xf32>
    %151 = vector.extract_strided_slice %139 {offsets = [0, 96], sizes = [8, 32], strides = [1, 1]} : vector<8x128xf32> to vector<8x32xf32>
    %cst_47 = arith.constant 5.000000e-01 : f32
    %152 = vector.broadcast %cst_47 : f32 to vector<8x32xf32>
    %153 = arith.mulf %152, %151 : vector<8x32xf32>
    %cst_48 = arith.constant 5.000000e-01 : f32
    %154 = vector.broadcast %cst_48 : f32 to vector<8x32xf32>
    %155 = arith.addf %153, %154 : vector<8x32xf32>
    %156 = arith.mulf %149, %132 : vector<8x32xf32>
    %157 = arith.mulf %144, %150 : vector<8x32xf32>
    %158 = arith.addf %156, %157 : vector<8x32xf32>
    %159 = math.tanh %158 : vector<8x32xf32>
    %160 = arith.mulf %155, %159 : vector<8x32xf32>
    %161 = vector.extract_strided_slice %5 {offsets = [48, 0], sizes = [8, 128], strides = [1, 1]} : vector<64x128xf32> to vector<8x128xf32>
    %162 = arith.truncf %160 : vector<8x32xf32> to vector<8x32xbf16>
    %cst_49 = arith.constant dense<0.000000e+00> : vector<8x128xf32>
    %163 = tpu.matmul %162, %6, %cst_49 {dimension_numbers = #tpu.dot_dimension_numbers<[1], [0], [0], [1], [0, 0, 1, 1], [], []>} : vector<8x32xbf16>, vector<32x128xbf16>, vector<8x128xf32> -> vector<8x128xf32>
    %164 = arith.addf %163, %161 : vector<8x128xf32>
    %165 = math.tanh %164 : vector<8x128xf32>
    %166 = vector.extract_strided_slice %165 {offsets = [0, 0], sizes = [8, 32], strides = [1, 1]} : vector<8x128xf32> to vector<8x32xf32>
    %cst_50 = arith.constant 5.000000e-01 : f32
    %167 = vector.broadcast %cst_50 : f32 to vector<8x32xf32>
    %168 = arith.mulf %167, %166 : vector<8x32xf32>
    %cst_51 = arith.constant 5.000000e-01 : f32
    %169 = vector.broadcast %cst_51 : f32 to vector<8x32xf32>
    %170 = arith.addf %168, %169 : vector<8x32xf32>
    %171 = vector.extract_strided_slice %165 {offsets = [0, 32], sizes = [8, 32], strides = [1, 1]} : vector<8x128xf32> to vector<8x32xf32>
    %cst_52 = arith.constant 5.000000e-01 : f32
    %172 = vector.broadcast %cst_52 : f32 to vector<8x32xf32>
    %173 = arith.mulf %172, %171 : vector<8x32xf32>
    %cst_53 = arith.constant 5.000000e-01 : f32
    %174 = vector.broadcast %cst_53 : f32 to vector<8x32xf32>
    %175 = arith.addf %173, %174 : vector<8x32xf32>
    %176 = vector.extract_strided_slice %165 {offsets = [0, 64], sizes = [8, 32], strides = [1, 1]} : vector<8x128xf32> to vector<8x32xf32>
    %177 = vector.extract_strided_slice %165 {offsets = [0, 96], sizes = [8, 32], strides = [1, 1]} : vector<8x128xf32> to vector<8x32xf32>
    %cst_54 = arith.constant 5.000000e-01 : f32
    %178 = vector.broadcast %cst_54 : f32 to vector<8x32xf32>
    %179 = arith.mulf %178, %177 : vector<8x32xf32>
    %cst_55 = arith.constant 5.000000e-01 : f32
    %180 = vector.broadcast %cst_55 : f32 to vector<8x32xf32>
    %181 = arith.addf %179, %180 : vector<8x32xf32>
    %182 = arith.mulf %175, %158 : vector<8x32xf32>
    %183 = arith.mulf %170, %176 : vector<8x32xf32>
    %184 = arith.addf %182, %183 : vector<8x32xf32>
    %185 = math.tanh %184 : vector<8x32xf32>
    %186 = arith.mulf %181, %185 : vector<8x32xf32>
    %187 = vector.extract_strided_slice %5 {offsets = [56, 0], sizes = [8, 128], strides = [1, 1]} : vector<64x128xf32> to vector<8x128xf32>
    %188 = arith.truncf %186 : vector<8x32xf32> to vector<8x32xbf16>
    %cst_56 = arith.constant dense<0.000000e+00> : vector<8x128xf32>
    %189 = tpu.matmul %188, %6, %cst_56 {dimension_numbers = #tpu.dot_dimension_numbers<[1], [0], [0], [1], [0, 0, 1, 1], [], []>} : vector<8x32xbf16>, vector<32x128xbf16>, vector<8x128xf32> -> vector<8x128xf32>
    %190 = arith.addf %189, %187 : vector<8x128xf32>
    %191 = math.tanh %190 : vector<8x128xf32>
    %192 = vector.extract_strided_slice %191 {offsets = [0, 0], sizes = [8, 32], strides = [1, 1]} : vector<8x128xf32> to vector<8x32xf32>
    %cst_57 = arith.constant 5.000000e-01 : f32
    %193 = vector.broadcast %cst_57 : f32 to vector<8x32xf32>
    %194 = arith.mulf %193, %192 : vector<8x32xf32>
    %cst_58 = arith.constant 5.000000e-01 : f32
    %195 = vector.broadcast %cst_58 : f32 to vector<8x32xf32>
    %196 = arith.addf %194, %195 : vector<8x32xf32>
    %197 = vector.extract_strided_slice %191 {offsets = [0, 32], sizes = [8, 32], strides = [1, 1]} : vector<8x128xf32> to vector<8x32xf32>
    %cst_59 = arith.constant 5.000000e-01 : f32
    %198 = vector.broadcast %cst_59 : f32 to vector<8x32xf32>
    %199 = arith.mulf %198, %197 : vector<8x32xf32>
    %cst_60 = arith.constant 5.000000e-01 : f32
    %200 = vector.broadcast %cst_60 : f32 to vector<8x32xf32>
    %201 = arith.addf %199, %200 : vector<8x32xf32>
    %202 = vector.extract_strided_slice %191 {offsets = [0, 64], sizes = [8, 32], strides = [1, 1]} : vector<8x128xf32> to vector<8x32xf32>
    %203 = vector.extract_strided_slice %191 {offsets = [0, 96], sizes = [8, 32], strides = [1, 1]} : vector<8x128xf32> to vector<8x32xf32>
    %cst_61 = arith.constant 5.000000e-01 : f32
    %204 = vector.broadcast %cst_61 : f32 to vector<8x32xf32>
    %205 = arith.mulf %204, %203 : vector<8x32xf32>
    %cst_62 = arith.constant 5.000000e-01 : f32
    %206 = vector.broadcast %cst_62 : f32 to vector<8x32xf32>
    %207 = arith.addf %205, %206 : vector<8x32xf32>
    %208 = arith.mulf %201, %184 : vector<8x32xf32>
    %209 = arith.mulf %196, %202 : vector<8x32xf32>
    %210 = arith.addf %208, %209 : vector<8x32xf32>
    %211 = math.tanh %210 : vector<8x32xf32>
    %212 = arith.mulf %207, %211 : vector<8x32xf32>
    %c0_63 = arith.constant 0 : index
    %c0_64 = arith.constant 0 : index
    %213 = vector.load %arg10[%c0_63, %c0_64] : memref<8x32xf32, #tpu.memory_space<vmem>>, vector<8x32xf32>
    tpu.vector_store %arg10[%c0_63, %c0_64], %212 {strides = array<i32>} : memref<8x32xf32, #tpu.memory_space<vmem>>, vector<8x32xf32>,
    %c0_65 = arith.constant 0 : index
    %c0_66 = arith.constant 0 : index
    %214 = vector.load %arg11[%c0_65, %c0_66] : memref<8x32xf32, #tpu.memory_space<vmem>>, vector<8x32xf32>
    tpu.vector_store %arg11[%c0_65, %c0_66], %210 {strides = array<i32>} : memref<8x32xf32, #tpu.memory_space<vmem>>, vector<8x32xf32>,
    %215 = tpu.concatenate %30, %56, %82, %108, %134, %160, %186, %212 in 0 : vector<8x32xf32>, vector<8x32xf32>, vector<8x32xf32>, vector<8x32xf32>, vector<8x32xf32>, vector<8x32xf32>, vector<8x32xf32>, vector<8x32xf32> -> vector<64x32xf32>
    %c0_67 = arith.constant 0 : index
    %c0_68 = arith.constant 0 : index
    %216 = vector.load %arg4[%c0_67, %c0_68] : memref<32x16xf32, #tpu.memory_space<vmem>>, vector<32x16xf32>
    %cst_69 = arith.constant dense<0.000000e+00> : vector<64x16xf32>
    %217 = tpu.matmul %215, %216, %cst_69 {dimension_numbers = #tpu.dot_dimension_numbers<[1], [0], [0], [1], [0, 0, 1, 1], [], []>} : vector<64x32xf32>, vector<32x16xf32>, vector<64x16xf32> -> vector<64x16xf32>
    %c0_70 = arith.constant 0 : index
    %c0_71 = arith.constant 0 : index
    %218 = vector.load %arg5[%c0_70, %c0_71] : memref<1x16xf32, #tpu.memory_space<vmem>>, vector<1x16xf32>
    %219 = vector.broadcast %218 : vector<1x16xf32> to vector<64x16xf32>
    %220 = arith.addf %217, %219 : vector<64x16xf32>
    %221 = math.tanh %220 : vector<64x16xf32>
    %c0_72 = arith.constant 0 : index
    %c0_73 = arith.constant 0 : index
    %222 = vector.load %arg6[%c0_72, %c0_73] : memref<1x16xf32, #tpu.memory_space<vmem>>, vector<1x16xf32>
    %223 = vector.broadcast %222 : vector<1x16xf32> to vector<64x16xf32>
    %224 = arith.mulf %221, %223 : vector<64x16xf32>
    %cst_74 = arith.constant dense<0.000000e+00> : vector<64xf32>
    %225 = vector.multi_reduction <add>, %224, %cst_74 [1] : vector<64x16xf32> to vector<64xf32>
    %226 = vector.shape_cast %225 : vector<64xf32> to vector<64x1xf32>
    %c0_75 = arith.constant 0 : index
    %c0_76 = arith.constant 0 : index
    %227 = vector.load %arg7[%c0_75, %c0_76] : memref<1x1xf32, #tpu.memory_space<vmem>>, vector<1x1xf32>
    %228 = vector.broadcast %227 : vector<1x1xf32> to vector<64x1xf32>
    %229 = arith.addf %226, %228 : vector<64x1xf32>
    %c0_77 = arith.constant 0 : index
    %c0_78 = arith.constant 0 : index
    %230 = vector.load %arg8[%c0_77, %c0_78] : memref<64x8xf32, #tpu.memory_space<vmem>>, vector<64x8xf32>
    %cst_79 = arith.constant 0.000000e+00 : f32
    %231 = vector.broadcast %cst_79 : f32 to vector<64x8xf32>
    %232 = arith.cmpf ogt, %230, %231 : vector<64x8xf32>
    %cst_80 = arith.constant -1.000000e+30 : f32
    %233 = vector.shape_cast %229 : vector<64x1xf32> to vector<64x1xf32>
    %234 = vector.broadcast %233 : vector<64x1xf32> to vector<64x8xf32>
    %235 = vector.broadcast %cst_80 : f32 to vector<64x8xf32>
    %236 = arith.select %232, %234, %235 : vector<64x8xi1>, vector<64x8xf32>
    %cst_81 = arith.constant dense<0xFF800000> : vector<8xf32>
    %237 = vector.multi_reduction <maximumf>, %236, %cst_81 [0] : vector<64x8xf32> to vector<8xf32>
    %238 = vector.shape_cast %237 : vector<8xf32> to vector<1x8xf32>
    %239 = vector.broadcast %238 : vector<1x8xf32> to vector<64x8xf32>
    %240 = arith.mulf %230, %239 : vector<64x8xf32>
    %cst_82 = arith.constant dense<0.000000e+00> : vector<64xf32>
    %241 = vector.multi_reduction <add>, %240, %cst_82 [1] : vector<64x8xf32> to vector<64xf32>
    %242 = vector.shape_cast %241 : vector<64xf32> to vector<64x1xf32>
    %243 = arith.subf %229, %242 : vector<64x1xf32>
    %244 = math.exp %243 : vector<64x1xf32>
    %245 = vector.broadcast %244 : vector<64x1xf32> to vector<64x8xf32>
    %246 = arith.mulf %230, %245 : vector<64x8xf32>
    %cst_83 = arith.constant dense<0.000000e+00> : vector<8xf32>
    %247 = vector.multi_reduction <add>, %246, %cst_83 [0] : vector<64x8xf32> to vector<8xf32>
    %248 = vector.shape_cast %247 : vector<8xf32> to vector<1x8xf32>
    %249 = vector.broadcast %248 : vector<1x8xf32> to vector<64x8xf32>
    %250 = arith.mulf %230, %249 : vector<64x8xf32>
    %cst_84 = arith.constant dense<0.000000e+00> : vector<64xf32>
    %251 = vector.multi_reduction <add>, %250, %cst_84 [1] : vector<64x8xf32> to vector<64xf32>
    %252 = vector.shape_cast %251 : vector<64xf32> to vector<64x1xf32>
    %253 = arith.divf %244, %252 : vector<64x1xf32>
    %254 = vector.broadcast %253 : vector<64x1xf32> to vector<64x32xf32>
    %255 = arith.mulf %215, %254 : vector<64x32xf32>
    %c0_85 = arith.constant 0 : index
    %c0_86 = arith.constant 0 : index
    %256 = vector.load %arg9[%c0_85, %c0_86] : memref<64x32xf32, #tpu.memory_space<vmem>>, vector<64x32xf32>
    tpu.vector_store %arg9[%c0_85, %c0_86], %255 {strides = array<i32>} : memref<64x32xf32, #tpu.memory_space<vmem>>, vector<64x32xf32>,
    return
  }
}

</mosaic_0001>

<llo_original>
// kernel: tpu_custom_call.1
$region0: #{tpu_custom_call.1}
  #allocation0 [shape = 'u32[]', space=smem, size = 0x4, offset = 0x4, fixed_abs, tag = 'smem constant byte address 0x4 - core index']
  #allocation1 [shape = 'u32[144,128]{1,0:T(1,128)}', space=vmem, size = 0x12000, scoped, tag = 'internal scratch']
  #allocation2 [shape = 'f32[1,1]{1,0:T(1,128)S(1)}', space=vmem, size = 0x200, scoped, tag = 'scoped memory for tpu_custom_call.1']
  %s0 = inlined_call_operand.vmem [shape: bf16[64,8], index: 0, kind: input, shape index: {}]
  %s1 = inlined_call_operand.vmem [shape: bf16[8,128], index: 1, kind: input, shape index: {}]
  %s2 = inlined_call_operand.vmem [shape: bf16[32,128], index: 2, kind: input, shape index: {}]
  %s3 = inlined_call_operand.vmem [shape: f32[1,128], index: 3, kind: input, shape index: {}]
  %s4 = inlined_call_operand.vmem [shape: f32[32,16], index: 4, kind: input, shape index: {}]
  %s5 = inlined_call_operand.vmem [shape: f32[1,16], index: 5, kind: input, shape index: {}]
  %s6 = inlined_call_operand.vmem [shape: f32[1,16], index: 6, kind: input, shape index: {}]
  %s7 = inlined_call_operand.<no memory space> [shape: f32[1,1], index: 7, kind: input, shape index: {}]
  %s8 = inlined_call_operand.vmem [shape: f32[64,8], index: 8, kind: input, shape index: {}]
  %s9 = inlined_call_operand.vmem [shape: f32[64,32], index: 9, kind: output, shape index: {0}]
  %s10 = inlined_call_operand.hbm [shape: f32[8,32], index: 10, kind: output, shape index: {1}]
  %s11 = inlined_call_operand.hbm [shape: f32[8,32], index: 11, kind: output, shape index: {2}]
  %12 = xla_tuple %s9, %s10, %s11
  %s13 = sld [smem:[#allocation0]]
  $region62: #{tpu_custom_call.1} parent=0
    _
  %s15 = ssub.s32 1, %s13
  %s16 = scalar_select 0, %s15, %s13
  %v17 = vstv %s7
  %18 = vst [vmem:[#allocation2] sm:$0x1] %v17
  $region1: #{tpu_custom_call.1} parent=0
    #allocation3 [shape = 'u8[4096]{0}', space=vmem, size = 0x1000, scoped, tag = 'output window, operand 1, single buffered']
    #allocation4 [shape = 's32[1]{0}', space=sflag, size = 0x4, scoped, tag = 'scoped memory for tpu_custom_call.1']
    #allocation5 [shape = 'u8[4096]{0}', space=vmem, size = 0x1000, scoped, tag = 'output window, operand 2, single buffered']
    #allocation6 [shape = 's32[1]{0}', space=sflag, size = 0x4, scoped, tag = 'scoped memory for tpu_custom_call.1']
    %19 = vsyncpa [#allocation4], 0
    %20 = vsyncpa [#allocation6], 0
    // Predicated region
    $region2: #{tpu_custom_call.1} parent=1 // pred_check
      _
    $region3: #{tpu_custom_call.1} parent=1 // pred_check_branch
      %22 = sbr.rel (0) target = $region5
    $region4: #{tpu_custom_call.1} parent=1 // pred_region
      _
    $region5: #{tpu_custom_call.1} parent=1 // pred_fallthru
      _
    // Predicated region
    $region6: #{tpu_custom_call.1} parent=1 // pred_check
      _
    $region7: #{tpu_custom_call.1} parent=1 // pred_check_branch
      %24 = sbr.rel (0) target = $region9
    $region8: #{tpu_custom_call.1} parent=1 // pred_region
      _
    $region9: #{tpu_custom_call.1} parent=1 // pred_fallthru
      _
    // Predicated region
    $region10: #{tpu_custom_call.1} parent=1 // pred_check
      _
    $region11: #{tpu_custom_call.1} parent=1 // pred_check_branch
      %26 = sbr.rel (0) target = $region13
    $region12: #{tpu_custom_call.1} parent=1 // pred_region
      _
    $region13: #{tpu_custom_call.1} parent=1 // pred_fallthru
      _
    // Predicated region
    $region14: #{tpu_custom_call.1} parent=1 // pred_check
      _
    $region15: #{tpu_custom_call.1} parent=1 // pred_check_branch
      %28 = sbr.rel (0) target = $region17
    $region16: #{tpu_custom_call.1} parent=1 // pred_region
      _
    $region17: #{tpu_custom_call.1} parent=1 // pred_fallthru
      _
    // Predicated region
    $region18: #{tpu_custom_call.1} parent=1 // pred_check
      _
    $region19: #{tpu_custom_call.1} parent=1 // pred_check_branch
      %30 = sbr.rel (0) target = $region21
    $region20: #{tpu_custom_call.1} parent=1 // pred_region
      _
    $region21: #{tpu_custom_call.1} parent=1 // pred_fallthru
      _
    // Predicated region
    $region22: #{tpu_custom_call.1} parent=1 // pred_check
      _
    $region23: #{tpu_custom_call.1} parent=1 // pred_check_branch
      %32 = sbr.rel (0) target = $region25
    $region24: #{tpu_custom_call.1} parent=1 // pred_region
      _
    $region25: #{tpu_custom_call.1} parent=1 // pred_fallthru
      _
    // Predicated region
    $region26: #{tpu_custom_call.1} parent=1 // pred_check
      _
    $region27: #{tpu_custom_call.1} parent=1 // pred_check_branch
      %34 = sbr.rel (0) target = $region29
    $region28: #{tpu_custom_call.1} parent=1 // pred_region
      _
    $region29: #{tpu_custom_call.1} parent=1 // pred_fallthru
      _
    // Predicated region
    $region30: #{tpu_custom_call.1} parent=1 // pred_check
      _
    $region31: #{tpu_custom_call.1} parent=1 // pred_check_branch
      %36 = sbr.rel (0) target = $region33
    $region32: #{tpu_custom_call.1} parent=1 // pred_region
      _
    $region33: #{tpu_custom_call.1} parent=1 // pred_fallthru
      _
    // Predicated region
    $region34: #{tpu_custom_call.1} parent=1 // pred_check
      _
    $region35: #{tpu_custom_call.1} parent=1 // pred_check_branch
      %38 = sbr.rel (0) target = $region37
    $region36: #{tpu_custom_call.1} parent=1 // pred_region
      _
    $region37: #{tpu_custom_call.1} parent=1 // pred_fallthru
      _
    %v40 = vld [vmem:[%s0] sm:$0xf]
    %v41 = vld [vmem:[%s0 + $0x4] sm:$0xf]
    %v42 = vld [vmem:[%s0 + $0x8] sm:$0xf]
    %v43 = vld [vmem:[%s0 + $0xc] sm:$0xf]
    %v44 = vld [vmem:[%s0 + $0x10] sm:$0xf]
    %v45 = vld [vmem:[%s0 + $0x14] sm:$0xf]
    %v46 = vld [vmem:[%s0 + $0x18] sm:$0xf]
    %v47 = vld [vmem:[%s0 + $0x1c] sm:$0xf]
    %v48 = vld [vmem:[%s1] sm:$0xf]
    %v49 = vld [vmem:[%s3] sm:$0x1]
    %v51 = vlaneseq
    %v52 = vshrl.u32 %v51, 7
    %v53 = vsub.s32 0, %v52
    %v54 = vrot.slane %v49, %v53
    %v64 = vunpack.c.l.b16 %v40
    %v65 = vunpack.c.l.b16 %v41
    %v66 = vunpack.c.l.b16 %v42
    %v67 = vunpack.c.l.b16 %v43
    %v68 = vunpack.c.l.b16 %v44
    %v69 = vunpack.c.l.b16 %v45
    %v70 = vunpack.c.l.b16 %v46
    %v71 = vunpack.c.l.b16 %v47
    %v72 = vpack.c.b16 %v65, %v64
    %v73 = vpack.c.b16 %v67, %v66
    %v74 = vpack.c.b16 %v69, %v68
    %v75 = vpack.c.b16 %v71, %v70
    %vm76 = vcmask 64512
    %v78 = vsel %vm76, %v72, 0
    %v81 = vsel %vm76, %v73, 0
    %v84 = vsel %vm76, %v74, 0
    %v87 = vsel %vm76, %v75, 0
    %vm89 = vcmask 1043456
    %v91 = vsel %vm89, %v48, 0
    %93 = vmatprep.subr.bf16.mxu0 0
    %94 = vmatpush1.bf16.msra.mxu0 %v91
    %95 = vmatprep.subr.bf16.mxu0 0
    %96 = vmatpush1.bf16.msra.mxu0 0
    %97 = vmatprep.subr.bf16.mxu0 0
    %98 = vmatpush1.bf16.msra.mxu0 0
    %99 = vmatprep.subr.bf16.mxu0 0
    %100 = vmatpush1.bf16.msra.mxu0 0
    %101 = vmatprep.subr.bf16.mxu0 0
    %102 = vmatpush1.bf16.msra.mxu0 0
    %103 = vmatprep.subr.bf16.mxu0 0
    %104 = vmatpush1.bf16.msra.mxu0 0
    %105 = vmatprep.subr.bf16.mxu0 0
    %106 = vmatpush1.bf16.msra.mxu0 0
    %107 = vmatprep.subr.bf16.mxu0 0
    %108 = vmatpush1.bf16.msra.mxu0 0
    %109 = vmatprep.subr.bf16.mxu0 0
    %110 = vmatpush1.bf16.msra.mxu0 0
    %111 = vmatprep.subr.bf16.mxu0 0
    %112 = vmatpush1.bf16.msra.mxu0 0
    %113 = vmatprep.subr.bf16.mxu0 0
    %114 = vmatpush1.bf16.msra.mxu0 0
    %115 = vmatprep.subr.bf16.mxu0 0
    %116 = vmatpush1.bf16.msra.mxu0 0
    %117 = vmatprep.subr.bf16.mxu0 0
    %118 = vmatpush1.bf16.msra.mxu0 0
    %119 = vmatprep.subr.bf16.mxu0 0
    %120 = vmatpush1.bf16.msra.mxu0 0
    %121 = vmatprep.subr.bf16.mxu0 0
    %122 = vmatpush1.bf16.msra.mxu0 0
    %123 = vmatprep.subr.bf16.mxu0 0
    %124 = vmatpush1.bf16.msra.mxu0 0
    %125 = vmatprep.mubr.bf16.mxu0 0
    %126 = vmatmul.mubr.bf16.gmra.mrb[0].mxu0 %v78
    %v127 = vpop.f32.mrb[0].mxu0
    %v128 = vadd.f32 %v54, %v127
    %v129 = vpop.f32.mrb[0].mxu0
    %v130 = vpop.f32.mrb[0].mxu0
    %v131 = vadd.f32 %v54, %v130
    %v132 = vpop.f32.mrb[0].mxu0
    %133 = vmatprep.mubr.bf16.mxu0 0
    %134 = vmatmul.mubr.bf16.gmra.mrb[0].mxu0 %v81
    %v135 = vpop.f32.mrb[0].mxu0
    %v136 = vadd.f32 %v54, %v135
    %v137 = vpop.f32.mrb[0].mxu0
    %v138 = vpop.f32.mrb[0].mxu0
    %v139 = vadd.f32 %v54, %v138
    %v140 = vpop.f32.mrb[0].mxu0
    %141 = vmatprep.mubr.bf16.mxu0 0
    %142 = vmatmul.mubr.bf16.gmra.mrb[0].mxu0 %v84
    %v143 = vpop.f32.mrb[0].mxu0
    %v144 = vadd.f32 %v54, %v143
    %v145 = vpop.f32.mrb[0].mxu0
    %v146 = vpop.f32.mrb[0].mxu0
    %v147 = vadd.f32 %v54, %v146
    %v148 = vpop.f32.mrb[0].mxu0
    %149 = vmatprep.mubr.bf16.mxu0 0
    %150 = vmatmul.mubr.bf16.gmra.mrb[0].mxu0 %v87
    %v151 = vpop.f32.mrb[0].mxu0
    %v152 = vadd.f32 %v54, %v151
    %v153 = vpop.f32.mrb[0].mxu0
    %v154 = vpop.f32.mrb[0].mxu0
    %v155 = vadd.f32 %v54, %v154
    %v156 = vpop.f32.mrb[0].mxu0
    %157 = vdwg.mxu0
    %v158 = vld [vmem:[%s2] sm:$0xf]
    %v159 = vld [vmem:[%s2 + $0x4] sm:$0xf]
    %v160 = vld [vmem:[%s2 + $0x8] sm:$0xf]
    %v161 = vld [vmem:[%s2 + $0xc] sm:$0xf]
    %v162 = vtanh.pop %v128
    %v163 = vmul.f32 %v162, 0.5
    %v164 = vadd.f32 %v163, 0.5
    %v165 = vmul.f32 %v164, 0.0
    %167 = vrot.lane.b32.xlu0 %v162, 64
    %v168 = vpop.permute.xlu0 %167
    %v170 = vmul.f32 %v164, %v168
    %172 = vrot.lane.b32.xlu0 %v170, 32
    %v173 = vpop.permute.xlu0 %172
    %v175 = vadd.f32 %v165, %v173
    %v176 = vtanh.pop %v175
    %178 = vrot.lane.b32.xlu0 %v176, 64
    %v179 = vpop.permute.xlu0 %178
    %v181 = vmul.f32 %v164, %v179
    %v182 = vpack.c.bf16 %v181, %v181
    %184 = vrot.lane.b32.xlu0 %v182, 32
    %v185 = vpop.permute.xlu0 %184
    %v190 = vunpack.c.l.b16 %v158
    %v191 = vunpack.c.l.b16 %v159
    %v192 = vunpack.c.l.b16 %v160
    %v193 = vunpack.c.l.b16 %v161
    %v194 = vpack.c.b16 %v191, %v190
    %v195 = vpack.c.b16 %v193, %v192
    %vm198 = vcmask 261120
    %v200 = vsel %vm198, %v185, 0
    %202 = vmatprep.subr.bf16.mxu0 0
    %203 = vmatpush1.bf16.msra.mxu0 %v194
    %204 = vmatprep.subr.bf16.mxu0 0
    %205 = vmatpush1.bf16.msra.mxu0 %v195
    %206 = vmatprep.subr.bf16.mxu0 0
    %207 = vmatpush1.bf16.msra.mxu0 0
    %208 = vmatprep.subr.bf16.mxu0 0
    %209 = vmatpush1.bf16.msra.mxu0 0
    %210 = vmatprep.subr.bf16.mxu0 0
    %211 = vmatpush1.bf16.msra.mxu0 0
    %212 = vmatprep.subr.bf16.mxu0 0
    %213 = vmatpush1.bf16.msra.mxu0 0
    %214 = vmatprep.subr.bf16.mxu0 0
    %215 = vmatpush1.bf16.msra.mxu0 0
    %216 = vmatprep.subr.bf16.mxu0 0
    %217 = vmatpush1.bf16.msra.mxu0 0
    %218 = vmatprep.subr.bf16.mxu0 0
    %219 = vmatpush1.bf16.msra.mxu0 0
    %220 = vmatprep.subr.bf16.mxu0 0
    %221 = vmatpush1.bf16.msra.mxu0 0
    %222 = vmatprep.subr.bf16.mxu0 0
    %223 = vmatpush1.bf16.msra.mxu0 0
    %224 = vmatprep.subr.bf16.mxu0 0
    %225 = vmatpush1.bf16.msra.mxu0 0
    %226 = vmatprep.subr.bf16.mxu0 0
    %227 = vmatpush1.bf16.msra.mxu0 0
    %228 = vmatprep.subr.bf16.mxu0 0
    %229 = vmatpush1.bf16.msra.mxu0 0
    %230 = vmatprep.subr.bf16.mxu0 0
    %231 = vmatpush1.bf16.msra.mxu0 0
    %232 = vmatprep.subr.bf16.mxu0 0
    %233 = vmatpush1.bf16.msra.mxu0 0
    %234 = vmatprep.mubr.bf16.mxu0 0
    %235 = vmatmul.mubr.bf16.gmra.mrb[0].mxu0 %v200
    %v236 = vpop.f32.mrb[0].mxu0
    %v237 = vadd.f32 %v131, %v236
    %v238 = vpop.f32.mrb[0].mxu0
    %v239 = vpop.f32.mrb[0].mxu0
    %v240 = vpop.f32.mrb[0].mxu0
    %241 = vdwg.mxu0
    %v242 = vtanh.pop %v237
    %v243 = vmul.f32 %v242, 0.5
    %v244 = vadd.f32 %v243, 0.5
    %v245 = vmul.f32 %v244, %v175
    %247 = vrot.lane.b32.xlu0 %v242, 64
    %v248 = vpop.permute.xlu0 %247
    %v250 = vmul.f32 %v244, %v248
    %252 = vrot.lane.b32.xlu0 %v250, 32
    %v253 = vpop.permute.xlu0 %252
    %v255 = vadd.f32 %v245, %v253
    %v256 = vtanh.pop %v255
    %258 = vrot.lane.b32.xlu0 %v256, 64
    %v259 = vpop.permute.xlu0 %258
    %v261 = vmul.f32 %v244, %v259
    %v262 = vpack.c.bf16 %v261, %v261
    %264 = vrot.lane.b32.xlu0 %v262, 32
    %v265 = vpop.permute.xlu0 %264
    %v267 = vsel %vm198, %v265, 0
    %269 = vmatprep.subr.bf16.mxu0 0
    %270 = vmatpush1.bf16.msra.mxu0 %v194
    %271 = vmatprep.subr.bf16.mxu0 0
    %272 = vmatpush1.bf16.msra.mxu0 %v195
    %273 = vmatprep.subr.bf16.mxu0 0
    %274 = vmatpush1.bf16.msra.mxu0 0
    %275 = vmatprep.subr.bf16.mxu0 0
    %276 = vmatpush1.bf16.msra.mxu0 0
    %277 = vmatprep.subr.bf16.mxu0 0
    %278 = vmatpush1.bf16.msra.mxu0 0
    %279 = vmatprep.subr.bf16.mxu0 0
    %280 = vmatpush1.bf16.msra.mxu0 0
    %281 = vmatprep.subr.bf16.mxu0 0
    %282 = vmatpush1.bf16.msra.mxu0 0
    %283 = vmatprep.subr.bf16.mxu0 0
    %284 = vmatpush1.bf16.msra.mxu0 0
    %285 = vmatprep.subr.bf16.mxu0 0
    %286 = vmatpush1.bf16.msra.mxu0 0
    %287 = vmatprep.subr.bf16.mxu0 0
    %288 = vmatpush1.bf16.msra.mxu0 0
    %289 = vmatprep.subr.bf16.mxu0 0
    %290 = vmatpush1.bf16.msra.mxu0 0
    %291 = vmatprep.subr.bf16.mxu0 0
    %292 = vmatpush1.bf16.msra.mxu0 0
    %293 = vmatprep.subr.bf16.mxu0 0
    %294 = vmatpush1.bf16.msra.mxu0 0
    %295 = vmatprep.subr.bf16.mxu0 0
    %296 = vmatpush1.bf16.msra.mxu0 0
    %297 = vmatprep.subr.bf16.mxu0 0
    %298 = vmatpush1.bf16.msra.mxu0 0
    %299 = vmatprep.subr.bf16.mxu0 0
    %300 = vmatpush1.bf16.msra.mxu0 0
    %301 = vmatprep.mubr.bf16.mxu0 0
    %302 = vmatmul.mubr.bf16.gmra.mrb[0].mxu0 %v267
    %v303 = vpop.f32.mrb[0].mxu0
    %v304 = vadd.f32 %v136, %v303
    %v305 = vpop.f32.mrb[0].mxu0
    %v306 = vpop.f32.mrb[0].mxu0
    %v307 = vpop.f32.mrb[0].mxu0
    %308 = vdwg.mxu0
    %v309 = vtanh.pop %v304
    %v310 = vmul.f32 %v309, 0.5
    %v311 = vadd.f32 %v310, 0.5
    %v312 = vmul.f32 %v311, %v255
    %314 = vrot.lane.b32.xlu0 %v309, 64
    %v315 = vpop.permute.xlu0 %314
    %v317 = vmul.f32 %v311, %v315
    %319 = vrot.lane.b32.xlu0 %v317, 32
    %v320 = vpop.permute.xlu0 %319
    %v322 = vadd.f32 %v312, %v320
    %v323 = vtanh.pop %v322
    %325 = vrot.lane.b32.xlu0 %v323, 64
    %v326 = vpop.permute.xlu0 %325
    %v328 = vmul.f32 %v311, %v326
    %v329 = vpack.c.bf16 %v328, %v328
    %331 = vrot.lane.b32.xlu0 %v329, 32
    %v332 = vpop.permute.xlu0 %331
    %v334 = vsel %vm198, %v332, 0
    %336 = vmatprep.subr.bf16.mxu0 0
    %337 = vmatpush1.bf16.msra.mxu0 %v194
    %338 = vmatprep.subr.bf16.mxu0 0
    %339 = vmatpush1.bf16.msra.mxu0 %v195
    %340 = vmatprep.subr.bf16.mxu0 0
    %341 = vmatpush1.bf16.msra.mxu0 0
    %342 = vmatprep.subr.bf16.mxu0 0
    %343 = vmatpush1.bf16.msra.mxu0 0
    %344 = vmatprep.subr.bf16.mxu0 0
    %345 = vmatpush1.bf16.msra.mxu0 0
    %346 = vmatprep.subr.bf16.mxu0 0
    %347 = vmatpush1.bf16.msra.mxu0 0
    %348 = vmatprep.subr.bf16.mxu0 0
    %349 = vmatpush1.bf16.msra.mxu0 0
    %350 = vmatprep.subr.bf16.mxu0 0
    %351 = vmatpush1.bf16.msra.mxu0 0
    %352 = vmatprep.subr.bf16.mxu0 0
    %353 = vmatpush1.bf16.msra.mxu0 0
    %354 = vmatprep.subr.bf16.mxu0 0
    %355 = vmatpush1.bf16.msra.mxu0 0
    %356 = vmatprep.subr.bf16.mxu0 0
    %357 = vmatpush1.bf16.msra.mxu0 0
    %358 = vmatprep.subr.bf16.mxu0 0
    %359 = vmatpush1.bf16.msra.mxu0 0
    %360 = vmatprep.subr.bf16.mxu0 0
    %361 = vmatpush1.bf16.msra.mxu0 0
    %362 = vmatprep.subr.bf16.mxu0 0
    %363 = vmatpush1.bf16.msra.mxu0 0
    %364 = vmatprep.subr.bf16.mxu0 0
    %365 = vmatpush1.bf16.msra.mxu0 0
    %366 = vmatprep.subr.bf16.mxu0 0
    %367 = vmatpush1.bf16.msra.mxu0 0
    %368 = vmatprep.mubr.bf16.mxu0 0
    %369 = vmatmul.mubr.bf16.gmra.mrb[0].mxu0 %v334
    %v370 = vpop.f32.mrb[0].mxu0
    %v371 = vadd.f32 %v139, %v370
    %v372 = vpop.f32.mrb[0].mxu0
    %v373 = vpop.f32.mrb[0].mxu0
    %v374 = vpop.f32.mrb[0].mxu0
    %375 = vdwg.mxu0
    %v376 = vtanh.pop %v371
    %v377 = vmul.f32 %v376, 0.5
    %v378 = vadd.f32 %v377, 0.5
    %v379 = vmul.f32 %v378, %v322
    %381 = vrot.lane.b32.xlu0 %v376, 64
    %v382 = vpop.permute.xlu0 %381
    %v384 = vmul.f32 %v378, %v382
    %386 = vrot.lane.b32.xlu0 %v384, 32
    %v387 = vpop.permute.xlu0 %386
    %v389 = vadd.f32 %v379, %v387
    %v390 = vtanh.pop %v389
    %392 = vrot.lane.b32.xlu0 %v390, 64
    %v393 = vpop.permute.xlu0 %392
    %v395 = vmul.f32 %v378, %v393
    %v396 = vpack.c.bf16 %v395, %v395
    %398 = vrot.lane.b32.xlu0 %v396, 32
    %v399 = vpop.permute.xlu0 %398
    %v401 = vsel %vm198, %v399, 0
    %403 = vmatprep.subr.bf16.mxu0 0
    %404 = vmatpush1.bf16.msra.mxu0 %v194
    %405 = vmatprep.subr.bf16.mxu0 0
    %406 = vmatpush1.bf16.msra.mxu0 %v195
    %407 = vmatprep.subr.bf16.mxu0 0
    %408 = vmatpush1.bf16.msra.mxu0 0
    %409 = vmatprep.subr.bf16.mxu0 0
    %410 = vmatpush1.bf16.msra.mxu0 0
    %411 = vmatprep.subr.bf16.mxu0 0
    %412 = vmatpush1.bf16.msra.mxu0 0
    %413 = vmatprep.subr.bf16.mxu0 0
    %414 = vmatpush1.bf16.msra.mxu0 0
    %415 = vmatprep.subr.bf16.mxu0 0
    %416 = vmatpush1.bf16.msra.mxu0 0
    %417 = vmatprep.subr.bf16.mxu0 0
    %418 = vmatpush1.bf16.msra.mxu0 0
    %419 = vmatprep.subr.bf16.mxu0 0
    %420 = vmatpush1.bf16.msra.mxu0 0
    %421 = vmatprep.subr.bf16.mxu0 0
    %422 = vmatpush1.bf16.msra.mxu0 0
    %423 = vmatprep.subr.bf16.mxu0 0
    %424 = vmatpush1.bf16.msra.mxu0 0
    %425 = vmatprep.subr.bf16.mxu0 0
    %426 = vmatpush1.bf16.msra.mxu0 0
    %427 = vmatprep.subr.bf16.mxu0 0
    %428 = vmatpush1.bf16.msra.mxu0 0
    %429 = vmatprep.subr.bf16.mxu0 0
    %430 = vmatpush1.bf16.msra.mxu0 0
    %431 = vmatprep.subr.bf16.mxu0 0
    %432 = vmatpush1.bf16.msra.mxu0 0
    %433 = vmatprep.subr.bf16.mxu0 0
    %434 = vmatpush1.bf16.msra.mxu0 0
    %435 = vmatprep.mubr.bf16.mxu0 0
    %436 = vmatmul.mubr.bf16.gmra.mrb[0].mxu0 %v401
    %v437 = vpop.f32.mrb[0].mxu0
    %v438 = vadd.f32 %v144, %v437
    %v439 = vpop.f32.mrb[0].mxu0
    %v440 = vpop.f32.mrb[0].mxu0
    %v441 = vpop.f32.mrb[0].mxu0
    %442 = vdwg.mxu0
    %v443 = vtanh.pop %v438
    %v444 = vmul.f32 %v443, 0.5
    %v445 = vadd.f32 %v444, 0.5
    %v446 = vmul.f32 %v445, %v389
    %448 = vrot.lane.b32.xlu0 %v443, 64
    %v449 = vpop.permute.xlu0 %448
    %v451 = vmul.f32 %v445, %v449
    %453 = vrot.lane.b32.xlu0 %v451, 32
    %v454 = vpop.permute.xlu0 %453
    %v456 = vadd.f32 %v446, %v454
    %v457 = vtanh.pop %v456
    %459 = vrot.lane.b32.xlu0 %v457, 64
    %v460 = vpop.permute.xlu0 %459
    %v462 = vmul.f32 %v445, %v460
    %v463 = vpack.c.bf16 %v462, %v462
    %465 = vrot.lane.b32.xlu0 %v463, 32
    %v466 = vpop.permute.xlu0 %465
    %v468 = vsel %vm198, %v466, 0
    %470 = vmatprep.subr.bf16.mxu0 0
    %471 = vmatpush1.bf16.msra.mxu0 %v194
    %472 = vmatprep.subr.bf16.mxu0 0
    %473 = vmatpush1.bf16.msra.mxu0 %v195
    %474 = vmatprep.subr.bf16.mxu0 0
    %475 = vmatpush1.bf16.msra.mxu0 0
    %476 = vmatprep.subr.bf16.mxu0 0
    %477 = vmatpush1.bf16.msra.mxu0 0
    %478 = vmatprep.subr.bf16.mxu0 0
    %479 = vmatpush1.bf16.msra.mxu0 0
    %480 = vmatprep.subr.bf16.mxu0 0
    %481 = vmatpush1.bf16.msra.mxu0 0
    %482 = vmatprep.subr.bf16.mxu0 0
    %483 = vmatpush1.bf16.msra.mxu0 0
    %484 = vmatprep.subr.bf16.mxu0 0
    %485 = vmatpush1.bf16.msra.mxu0 0
    %486 = vmatprep.subr.bf16.mxu0 0
    %487 = vmatpush1.bf16.msra.mxu0 0
    %488 = vmatprep.subr.bf16.mxu0 0
    %489 = vmatpush1.bf16.msra.mxu0 0
    %490 = vmatprep.subr.bf16.mxu0 0
    %491 = vmatpush1.bf16.msra.mxu0 0
    %492 = vmatprep.subr.bf16.mxu0 0
    %493 = vmatpush1.bf16.msra.mxu0 0
    %494 = vmatprep.subr.bf16.mxu0 0
    %495 = vmatpush1.bf16.msra.mxu0 0
    %496 = vmatprep.subr.bf16.mxu0 0
    %497 = vmatpush1.bf16.msra.mxu0 0
    %498 = vmatprep.subr.bf16.mxu0 0
    %499 = vmatpush1.bf16.msra.mxu0 0
    %500 = vmatprep.subr.bf16.mxu0 0
    %501 = vmatpush1.bf16.msra.mxu0 0
    %502 = vmatprep.mubr.bf16.mxu0 0
    %503 = vmatmul.mubr.bf16.gmra.mrb[0].mxu0 %v468
    %v504 = vpop.f32.mrb[0].mxu0
    %v505 = vadd.f32 %v147, %v504
    %v506 = vpop.f32.mrb[0].mxu0
    %v507 = vpop.f32.mrb[0].mxu0
    %v508 = vpop.f32.mrb[0].mxu0
    %509 = vdwg.mxu0
    %v510 = vtanh.pop %v505
    %v511 = vmul.f32 %v510, 0.5
    %v512 = vadd.f32 %v511, 0.5
    %v513 = vmul.f32 %v512, %v456
    %515 = vrot.lane.b32.xlu0 %v510, 64
    %v516 = vpop.permute.xlu0 %515
    %v518 = vmul.f32 %v512, %v516
    %520 = vrot.lane.b32.xlu0 %v518, 32
    %v521 = vpop.permute.xlu0 %520
    %v523 = vadd.f32 %v513, %v521
    %v524 = vtanh.pop %v523
    %526 = vrot.lane.b32.xlu0 %v524, 64
    %v527 = vpop.permute.xlu0 %526
    %v529 = vmul.f32 %v512, %v527
    %v530 = vpack.c.bf16 %v529, %v529
    %532 = vrot.lane.b32.xlu0 %v530, 32
    %v533 = vpop.permute.xlu0 %532
    %v535 = vsel %vm198, %v533, 0
    %537 = vmatprep.subr.bf16.mxu0 0
    %538 = vmatpush1.bf16.msra.mxu0 %v194
    %539 = vmatprep.subr.bf16.mxu0 0
    %540 = vmatpush1.bf16.msra.mxu0 %v195
    %541 = vmatprep.subr.bf16.mxu0 0
    %542 = vmatpush1.bf16.msra.mxu0 0
    %543 = vmatprep.subr.bf16.mxu0 0
    %544 = vmatpush1.bf16.msra.mxu0 0
    %545 = vmatprep.subr.bf16.mxu0 0
    %546 = vmatpush1.bf16.msra.mxu0 0
    %547 = vmatprep.subr.bf16.mxu0 0
    %548 = vmatpush1.bf16.msra.mxu0 0
    %549 = vmatprep.subr.bf16.mxu0 0
    %550 = vmatpush1.bf16.msra.mxu0 0
    %551 = vmatprep.subr.bf16.mxu0 0
    %552 = vmatpush1.bf16.msra.mxu0 0
    %553 = vmatprep.subr.bf16.mxu0 0
    %554 = vmatpush1.bf16.msra.mxu0 0
    %555 = vmatprep.subr.bf16.mxu0 0
    %556 = vmatpush1.bf16.msra.mxu0 0
    %557 = vmatprep.subr.bf16.mxu0 0
    %558 = vmatpush1.bf16.msra.mxu0 0
    %559 = vmatprep.subr.bf16.mxu0 0
    %560 = vmatpush1.bf16.msra.mxu0 0
    %561 = vmatprep.subr.bf16.mxu0 0
    %562 = vmatpush1.bf16.msra.mxu0 0
    %563 = vmatprep.subr.bf16.mxu0 0
    %564 = vmatpush1.bf16.msra.mxu0 0
    %565 = vmatprep.subr.bf16.mxu0 0
    %566 = vmatpush1.bf16.msra.mxu0 0
    %567 = vmatprep.subr.bf16.mxu0 0
    %568 = vmatpush1.bf16.msra.mxu0 0
    %569 = vmatprep.mubr.bf16.mxu0 0
    %570 = vmatmul.mubr.bf16.gmra.mrb[0].mxu0 %v535
    %v571 = vpop.f32.mrb[0].mxu0
    %v572 = vadd.f32 %v152, %v571
    %v573 = vpop.f32.mrb[0].mxu0
    %v574 = vpop.f32.mrb[0].mxu0
    %v575 = vpop.f32.mrb[0].mxu0
    %576 = vdwg.mxu0
    %v577 = vtanh.pop %v572
    %v578 = vmul.f32 %v577, 0.5
    %v579 = vadd.f32 %v578, 0.5
    %v580 = vmul.f32 %v579, %v523
    %582 = vrot.lane.b32.xlu0 %v577, 64
    %v583 = vpop.permute.xlu0 %582
    %v585 = vmul.f32 %v579, %v583
    %587 = vrot.lane.b32.xlu0 %v585, 32
    %v588 = vpop.permute.xlu0 %587
    %v590 = vadd.f32 %v580, %v588
    %v591 = vtanh.pop %v590
    %593 = vrot.lane.b32.xlu0 %v591, 64
    %v594 = vpop.permute.xlu0 %593
    %v596 = vmul.f32 %v579, %v594
    %v597 = vpack.c.bf16 %v596, %v596
    %599 = vrot.lane.b32.xlu0 %v597, 32
    %v600 = vpop.permute.xlu0 %599
    %v602 = vsel %vm198, %v600, 0
    %604 = vmatprep.subr.bf16.mxu0 0
    %605 = vmatpush1.bf16.msra.mxu0 %v194
    %606 = vmatprep.subr.bf16.mxu0 0
    %607 = vmatpush1.bf16.msra.mxu0 %v195
    %608 = vmatprep.subr.bf16.mxu0 0
    %609 = vmatpush1.bf16.msra.mxu0 0
    %610 = vmatprep.subr.bf16.mxu0 0
    %611 = vmatpush1.bf16.msra.mxu0 0
    %612 = vmatprep.subr.bf16.mxu0 0
    %613 = vmatpush1.bf16.msra.mxu0 0
    %614 = vmatprep.subr.bf16.mxu0 0
    %615 = vmatpush1.bf16.msra.mxu0 0
    %616 = vmatprep.subr.bf16.mxu0 0
    %617 = vmatpush1.bf16.msra.mxu0 0
    %618 = vmatprep.subr.bf16.mxu0 0
    %619 = vmatpush1.bf16.msra.mxu0 0
    %620 = vmatprep.subr.bf16.mxu0 0
    %621 = vmatpush1.bf16.msra.mxu0 0
    %622 = vmatprep.subr.bf16.mxu0 0
    %623 = vmatpush1.bf16.msra.mxu0 0
    %624 = vmatprep.subr.bf16.mxu0 0
    %625 = vmatpush1.bf16.msra.mxu0 0
    %626 = vmatprep.subr.bf16.mxu0 0
    %627 = vmatpush1.bf16.msra.mxu0 0
    %628 = vmatprep.subr.bf16.mxu0 0
    %629 = vmatpush1.bf16.msra.mxu0 0
    %630 = vmatprep.subr.bf16.mxu0 0
    %631 = vmatpush1.bf16.msra.mxu0 0
    %632 = vmatprep.subr.bf16.mxu0 0
    %633 = vmatpush1.bf16.msra.mxu0 0
    %634 = vmatprep.subr.bf16.mxu0 0
    %635 = vmatpush1.bf16.msra.mxu0 0
    %636 = vmatprep.mubr.bf16.mxu0 0
    %637 = vmatmul.mubr.bf16.gmra.mrb[0].mxu0 %v602
    %v638 = vpop.f32.mrb[0].mxu0
    %v639 = vadd.f32 %v155, %v638
    %v640 = vpop.f32.mrb[0].mxu0
    %v641 = vpop.f32.mrb[0].mxu0
    %v642 = vpop.f32.mrb[0].mxu0
    %643 = vdwg.mxu0
    %v644 = vtanh.pop %v639
    %v645 = vmul.f32 %v644, 0.5
    %v646 = vadd.f32 %v645, 0.5
    %v647 = vmul.f32 %v646, %v590
    %649 = vrot.lane.b32.xlu0 %v644, 64
    %v650 = vpop.permute.xlu0 %649
    %v652 = vmul.f32 %v646, %v650
    %654 = vrot.lane.b32.xlu0 %v652, 32
    %v655 = vpop.permute.xlu0 %654
    %v657 = vadd.f32 %v647, %v655
    %v658 = vtanh.pop %v657
    %660 = vrot.lane.b32.xlu0 %v658, 64
    %v661 = vpop.permute.xlu0 %660
    %v663 = vmul.f32 %v646, %v661
    %665 = vrot.lane.b32.xlu0 %v663, 32
    %v666 = vpop.permute.xlu0 %665
    %668 = vst.msk [vmem:[#allocation3] sm:$0xff] %vm198, %v666
    %670 = vrot.lane.b32.xlu0 %v657, 96
    %v671 = vpop.permute.xlu0 %670
    %673 = vst.msk [vmem:[#allocation5] sm:$0xff] %vm198, %v671
    %v674 = vld [vmem:[%s4] sm:$0xff]
    %v675 = vld [vmem:[%s4 + $0x8] sm:$0xff]
    %v676 = vld [vmem:[%s4 + $0x10] sm:$0xff]
    %v677 = vld [vmem:[%s4 + $0x18] sm:$0xff]
    %v678 = vld [vmem:[%s5] sm:$0x1]
    %v680 = vlaneseq
    %v681 = vshrl.u32 %v680, 7
    %v682 = vsub.s32 0, %v681
    %v683 = vrot.slane %v678, %v682
    %692 = vrot.lane.b32.xlu0 %v181, 32
    %v693 = vpop.permute.xlu0 %692
    %694 = vrot.lane.b32.xlu0 %v261, 32
    %v695 = vpop.permute.xlu0 %694
    %696 = vrot.lane.b32.xlu0 %v328, 32
    %v697 = vpop.permute.xlu0 %696
    %698 = vrot.lane.b32.xlu0 %v395, 32
    %v699 = vpop.permute.xlu0 %698
    %700 = vrot.lane.b32.xlu0 %v462, 32
    %v701 = vpop.permute.xlu0 %700
    %702 = vrot.lane.b32.xlu0 %v529, 32
    %v703 = vpop.permute.xlu0 %702
    %704 = vrot.lane.b32.xlu0 %v596, 32
    %v705 = vpop.permute.xlu0 %704
    %v706 = vsel %vm198, %v693, 0
    %v708 = vsel %vm198, %v695, 0
    %v710 = vsel %vm198, %v697, 0
    %v712 = vsel %vm198, %v699, 0
    %v714 = vsel %vm198, %v701, 0
    %v716 = vsel %vm198, %v703, 0
    %v718 = vsel %vm198, %v705, 0
    %v720 = vsel %vm198, %v666, 0
    %722 = vmatprep.subr.mxu0 0.0
    %723 = vmatpush1.msra.mxu0 %v674
    %724 = vmatprep.subr.mxu0 0.0
    %725 = vmatpush1.msra.mxu0 %v675
    %726 = vmatprep.subr.mxu0 0.0
    %727 = vmatpush1.msra.mxu0 %v676
    %728 = vmatprep.subr.mxu0 0.0
    %729 = vmatpush1.msra.mxu0 %v677
    %730 = vmatprep.subr.mxu0 0.0
    %731 = vmatpush1.msra.mxu0 0.0
    %732 = vmatprep.subr.mxu0 0.0
    %733 = vmatpush1.msra.mxu0 0.0
    %734 = vmatprep.subr.mxu0 0.0
    %735 = vmatpush1.msra.mxu0 0.0
    %736 = vmatprep.subr.mxu0 0.0
    %737 = vmatpush1.msra.mxu0 0.0
    %738 = vmatprep.subr.mxu0 0.0
    %739 = vmatpush1.msra.mxu0 0.0
    %740 = vmatprep.subr.mxu0 0.0
    %741 = vmatpush1.msra.mxu0 0.0
    %742 = vmatprep.subr.mxu0 0.0
    %743 = vmatpush1.msra.mxu0 0.0
    %744 = vmatprep.subr.mxu0 0.0
    %745 = vmatpush1.msra.mxu0 0.0
    %746 = vmatprep.subr.mxu0 0.0
    %747 = vmatpush1.msra.mxu0 0.0
    %748 = vmatprep.subr.mxu0 0.0
    %749 = vmatpush1.msra.mxu0 0.0
    %750 = vmatprep.subr.mxu0 0.0
    %751 = vmatpush1.msra.mxu0 0.0
    %752 = vmatprep.subr.mxu0 0.0
    %753 = vmatpush1.msra.mxu0 0.0
    %754 = vmatprep.subr.mxu0 0.0
    %755 = vmatpush1.msra.mxu0 0.0
    %756 = vmatprep.subr.mxu0 0.0
    %757 = vmatpush1.msra.mxu0 0.0
    %758 = vmatprep.subr.mxu0 0.0
    %759 = vmatpush1.msra.mxu0 0.0
    %760 = vmatprep.subr.mxu0 0.0
    %761 = vmatpush1.msra.mxu0 0.0
    %762 = vmatprep.subr.mxu0 0.0
    %763 = vmatpush1.msra.mxu0 0.0
    %764 = vmatprep.subr.mxu0 0.0
    %765 = vmatpush1.msra.mxu0 0.0
    %766 = vmatprep.subr.mxu0 0.0
    %767 = vmatpush1.msra.mxu0 0.0
    %768 = vmatprep.subr.mxu0 0.0
    %769 = vmatpush1.msra.mxu0 0.0
    %770 = vmatprep.subr.mxu0 0.0
    %771 = vmatpush1.msra.mxu0 0.0
    %772 = vmatprep.subr.mxu0 0.0
    %773 = vmatpush1.msra.mxu0 0.0
    %774 = vmatprep.subr.mxu0 0.0
    %775 = vmatpush1.msra.mxu0 0.0
    %776 = vmatprep.subr.mxu0 0.0
    %777 = vmatpush1.msra.mxu0 0.0
    %778 = vmatprep.subr.mxu0 0.0
    %779 = vmatpush1.msra.mxu0 0.0
    %780 = vmatprep.subr.mxu0 0.0
    %781 = vmatpush1.msra.mxu0 0.0
    %782 = vmatprep.subr.mxu0 0.0
    %783 = vmatpush1.msra.mxu0 0.0
    %784 = vmatprep.subr.mxu0 0.0
    %785 = vmatpush1.msra.mxu0 0.0
    %786 = vmatprep.mubr.f32.mxu0 0.0
    %787 = vmatmul.mubr.f32.gmra.mrb[0].mxu0 %v706
    %v788 = vpop.f32.mrb[0].mxu0
    %v789 = vadd.f32 %v683, %v788
    %v790 = vpop.f32.mrb[0].mxu0
    %791 = vmatprep.mubr.f32.mxu0 0.0
    %792 = vmatmul.mubr.f32.gmra.mrb[0].mxu0 %v708
    %v793 = vpop.f32.mrb[0].mxu0
    %v794 = vadd.f32 %v683, %v793
    %v795 = vpop.f32.mrb[0].mxu0
    %796 = vmatprep.mubr.f32.mxu0 0.0
    %797 = vmatmul.mubr.f32.gmra.mrb[0].mxu0 %v710
    %v798 = vpop.f32.mrb[0].mxu0
    %v799 = vadd.f32 %v683, %v798
    %v800 = vpop.f32.mrb[0].mxu0
    %801 = vmatprep.mubr.f32.mxu0 0.0
    %802 = vmatmul.mubr.f32.gmra.mrb[0].mxu0 %v712
    %v803 = vpop.f32.mrb[0].mxu0
    %v804 = vadd.f32 %v683, %v803
    %v805 = vpop.f32.mrb[0].mxu0
    %806 = vmatprep.mubr.f32.mxu0 0.0
    %807 = vmatmul.mubr.f32.gmra.mrb[0].mxu0 %v714
    %v808 = vpop.f32.mrb[0].mxu0
    %v809 = vadd.f32 %v683, %v808
    %v810 = vpop.f32.mrb[0].mxu0
    %811 = vmatprep.mubr.f32.mxu0 0.0
    %812 = vmatmul.mubr.f32.gmra.mrb[0].mxu0 %v716
    %v813 = vpop.f32.mrb[0].mxu0
    %v814 = vadd.f32 %v683, %v813
    %v815 = vpop.f32.mrb[0].mxu0
    %816 = vmatprep.mubr.f32.mxu0 0.0
    %817 = vmatmul.mubr.f32.gmra.mrb[0].mxu0 %v718
    %v818 = vpop.f32.mrb[0].mxu0
    %v819 = vadd.f32 %v683, %v818
    %v820 = vpop.f32.mrb[0].mxu0
    %821 = vmatprep.mubr.f32.mxu0 0.0
    %822 = vmatmul.mubr.f32.gmra.mrb[0].mxu0 %v720
    %v823 = vpop.f32.mrb[0].mxu0
    %v824 = vadd.f32 %v683, %v823
    %v825 = vpop.f32.mrb[0].mxu0
    %826 = vdwg.mxu0
    %v827 = vtanh.pop %v789
    %v828 = vtanh.pop %v794
    %v829 = vtanh.pop %v799
    %v830 = vtanh.pop %v804
    %v831 = vtanh.pop %v809
    %v832 = vtanh.pop %v814
    %v833 = vtanh.pop %v819
    %v834 = vtanh.pop %v824
    %v835 = vld [vmem:[%s6] sm:$0x1]
    %v837 = vlaneseq
    %v838 = vshrl.u32 %v837, 7
    %v839 = vsub.s32 0, %v838
    %v840 = vrot.slane %v835, %v839
    %v842 = vmul.f32 %v827, %v840
    %v843 = vmul.f32 %v828, %v840
    %v844 = vmul.f32 %v829, %v840
    %v845 = vmul.f32 %v830, %v840
    %v846 = vmul.f32 %v831, %v840
    %v847 = vmul.f32 %v832, %v840
    %v848 = vmul.f32 %v833, %v840
    %v849 = vmul.f32 %v834, %v840
    %vm850 = vcmask 130048
    %v851 = vsel %vm850, %v842, 0.0
    %852 = vadd.xlane.f32.xlu0 %v851
    %v853 = vpop.xlane.xlu0 %852
    %v854 = vsel %vm850, %v843, 0.0
    %855 = vadd.xlane.f32.xlu0 %v854
    %v856 = vpop.xlane.xlu0 %855
    %v857 = vsel %vm850, %v844, 0.0
    %858 = vadd.xlane.f32.xlu0 %v857
    %v859 = vpop.xlane.xlu0 %858
    %v860 = vsel %vm850, %v845, 0.0
    %861 = vadd.xlane.f32.xlu0 %v860
    %v862 = vpop.xlane.xlu0 %861
    %v863 = vsel %vm850, %v846, 0.0
    %864 = vadd.xlane.f32.xlu0 %v863
    %v865 = vpop.xlane.xlu0 %864
    %v866 = vsel %vm850, %v847, 0.0
    %867 = vadd.xlane.f32.xlu0 %v866
    %v868 = vpop.xlane.xlu0 %867
    %v869 = vsel %vm850, %v848, 0.0
    %870 = vadd.xlane.f32.xlu0 %v869
    %v871 = vpop.xlane.xlu0 %870
    %v872 = vsel %vm850, %v849, 0.0
    %873 = vadd.xlane.f32.xlu0 %v872
    %v874 = vpop.xlane.xlu0 %873
    %v875 = vld [vmem:[#allocation2] sm:$0x1]
    %v877 = vlaneseq
    %v878 = vshrl.u32 %v877, 7
    %v879 = vsub.s32 0, %v878
    %v880 = vrot.slane %v875, %v879
    %v882 = vadd.f32 %v853, %v880
    %v883 = vadd.f32 %v856, %v880
    %v884 = vadd.f32 %v859, %v880
    %v885 = vadd.f32 %v862, %v880
    %v886 = vadd.f32 %v865, %v880
    %v887 = vadd.f32 %v868, %v880
    %v888 = vadd.f32 %v871, %v880
    %v889 = vadd.f32 %v874, %v880
    %v890 = vld [vmem:[%s8] sm:$0xff]
    %v891 = vld [vmem:[%s8 + $0x8] sm:$0xff]
    %v892 = vld [vmem:[%s8 + $0x10] sm:$0xff]
    %v893 = vld [vmem:[%s8 + $0x18] sm:$0xff]
    %v894 = vld [vmem:[%s8 + $0x20] sm:$0xff]
    %v895 = vld [vmem:[%s8 + $0x28] sm:$0xff]
    %v896 = vld [vmem:[%s8 + $0x30] sm:$0xff]
    %v897 = vld [vmem:[%s8 + $0x38] sm:$0xff]
    %vm898 = vcmp.gt.f32.partialorder %v890, 0.0
    %vm899 = vcmp.gt.f32.partialorder %v891, 0.0
    %vm900 = vcmp.gt.f32.partialorder %v892, 0.0
    %vm901 = vcmp.gt.f32.partialorder %v893, 0.0
    %vm902 = vcmp.gt.f32.partialorder %v894, 0.0
    %vm903 = vcmp.gt.f32.partialorder %v895, 0.0
    %vm904 = vcmp.gt.f32.partialorder %v896, 0.0
    %vm905 = vcmp.gt.f32.partialorder %v897, 0.0
    %907 = vset.pattern.permute.xlu0 0
    %908 = vperm.xlu0 %907, %v882
    %v909 = vpop.permute.xlu0 %908
    %912 = vset.pattern.permute.xlu0 0
    %913 = vperm.xlu0 %912, %v883
    %v914 = vpop.permute.xlu0 %913
    %917 = vset.pattern.permute.xlu0 0
    %918 = vperm.xlu0 %917, %v884
    %v919 = vpop.permute.xlu0 %918
    %922 = vset.pattern.permute.xlu0 0
    %923 = vperm.xlu0 %922, %v885
    %v924 = vpop.permute.xlu0 %923
    %927 = vset.pattern.permute.xlu0 0
    %928 = vperm.xlu0 %927, %v886
    %v929 = vpop.permute.xlu0 %928
    %932 = vset.pattern.permute.xlu0 0
    %933 = vperm.xlu0 %932, %v887
    %v934 = vpop.permute.xlu0 %933
    %937 = vset.pattern.permute.xlu0 0
    %938 = vperm.xlu0 %937, %v888
    %v939 = vpop.permute.xlu0 %938
    %942 = vset.pattern.permute.xlu0 0
    %943 = vperm.xlu0 %942, %v889
    %v944 = vpop.permute.xlu0 %943
    %v946 = vsel %vm898, %v909, -1e+30
    %v947 = vsel %vm899, %v914, -1e+30
    %v948 = vsel %vm900, %v919, -1e+30
    %v949 = vsel %vm901, %v924, -1e+30
    %v950 = vsel %vm902, %v929, -1e+30
    %v951 = vsel %vm903, %v934, -1e+30
    %v952 = vsel %vm904, %v939, -1e+30
    %v953 = vsel %vm905, %v944, -1e+30
    %v954 = vsel %vm76, %v946, -inf
    %v955 = vsel %vm76, %v947, -inf
    %v956 = vsel %vm76, %v948, -inf
    %v957 = vsel %vm76, %v949, -inf
    %v958 = vsel %vm76, %v950, -inf
    %v959 = vmax.f32 %v954, %v958
    %v960 = vsel %vm76, %v951, -inf
    %v961 = vmax.f32 %v955, %v960
    %v962 = vsel %vm76, %v952, -inf
    %v963 = vmax.f32 %v956, %v962
    %v964 = vsel %vm76, %v953, -inf
    %v965 = vmax.f32 %v957, %v964
    %v966 = vmax.f32 %v959, %v961
    %v967 = vmax.f32 %v963, %v965
    %v968 = vmax.f32 %v966, %v967
    %v969 = vrot.slane %v968, 4
    %v970 = vmax.f32 %v968, %v969
    %v971 = vrot.slane %v970, 2
    %v972 = vmax.f32 %v970, %v971
    %v973 = vrot.slane %v972, 1
    %v974 = vmax.f32 %v972, %v973
    %v975 = vmul.f32 %v890, %v974
    %v976 = vmul.f32 %v891, %v974
    %v977 = vmul.f32 %v892, %v974
    %v978 = vmul.f32 %v893, %v974
    %v979 = vmul.f32 %v894, %v974
    %v980 = vmul.f32 %v895, %v974
    %v981 = vmul.f32 %v896, %v974
    %v982 = vmul.f32 %v897, %v974
    %v983 = vsel %vm76, %v975, 0.0
    %984 = vadd.xlane.f32.xlu0 %v983
    %v985 = vpop.xlane.xlu0 %984
    %v986 = vsel %vm76, %v976, 0.0
    %987 = vadd.xlane.f32.xlu0 %v986
    %v988 = vpop.xlane.xlu0 %987
    %v989 = vsel %vm76, %v977, 0.0
    %990 = vadd.xlane.f32.xlu0 %v989
    %v991 = vpop.xlane.xlu0 %990
    %v992 = vsel %vm76, %v978, 0.0
    %993 = vadd.xlane.f32.xlu0 %v992
    %v994 = vpop.xlane.xlu0 %993
    %v995 = vsel %vm76, %v979, 0.0
    %996 = vadd.xlane.f32.xlu0 %v995
    %v997 = vpop.xlane.xlu0 %996
    %v998 = vsel %vm76, %v980, 0.0
    %999 = vadd.xlane.f32.xlu0 %v998
    %v1000 = vpop.xlane.xlu0 %999
    %v1001 = vsel %vm76, %v981, 0.0
    %1002 = vadd.xlane.f32.xlu0 %v1001
    %v1003 = vpop.xlane.xlu0 %1002
    %v1004 = vsel %vm76, %v982, 0.0
    %1005 = vadd.xlane.f32.xlu0 %v1004
    %v1006 = vpop.xlane.xlu0 %1005
    %v1007 = vsub.f32 %v882, %v985
    %v1008 = vsub.f32 %v883, %v988
    %v1009 = vsub.f32 %v884, %v991
    %v1010 = vsub.f32 %v885, %v994
    %v1011 = vsub.f32 %v886, %v997
    %v1012 = vsub.f32 %v887, %v1000
    %v1013 = vsub.f32 %v888, %v1003
    %v1014 = vsub.f32 %v889, %v1006
    %v1015 = vmul.f32 %v1007, 1.442695
    %v1016 = vpow.pop %v1015
    %v1017 = vmul.f32 %v1008, 1.442695
    %v1018 = vpow.pop %v1017
    %v1019 = vmul.f32 %v1009, 1.442695
    %v1020 = vpow.pop %v1019
    %v1021 = vmul.f32 %v1010, 1.442695
    %v1022 = vpow.pop %v1021
    %v1023 = vmul.f32 %v1011, 1.442695
    %v1024 = vpow.pop %v1023
    %v1025 = vmul.f32 %v1012, 1.442695
    %v1026 = vpow.pop %v1025
    %v1027 = vmul.f32 %v1013, 1.442695
    %v1028 = vpow.pop %v1027
    %v1029 = vmul.f32 %v1014, 1.442695
    %v1030 = vpow.pop %v1029
    %1032 = vset.pattern.permute.xlu0 0
    %1033 = vperm.xlu0 %1032, %v1016
    %v1034 = vpop.permute.xlu0 %1033
    %1037 = vset.pattern.permute.xlu0 0
    %1038 = vperm.xlu0 %1037, %v1018
    %v1039 = vpop.permute.xlu0 %1038
    %1042 = vset.pattern.permute.xlu0 0
    %1043 = vperm.xlu0 %1042, %v1020
    %v1044 = vpop.permute.xlu0 %1043
    %1047 = vset.pattern.permute.xlu0 0
    %1048 = vperm.xlu0 %1047, %v1022
    %v1049 = vpop.permute.xlu0 %1048
    %1052 = vset.pattern.permute.xlu0 0
    %1053 = vperm.xlu0 %1052, %v1024
    %v1054 = vpop.permute.xlu0 %1053
    %1057 = vset.pattern.permute.xlu0 0
    %1058 = vperm.xlu0 %1057, %v1026
    %v1059 = vpop.permute.xlu0 %1058
    %1062 = vset.pattern.permute.xlu0 0
    %1063 = vperm.xlu0 %1062, %v1028
    %v1064 = vpop.permute.xlu0 %1063
    %1067 = vset.pattern.permute.xlu0 0
    %1068 = vperm.xlu0 %1067, %v1030
    %v1069 = vpop.permute.xlu0 %1068
    %v1071 = vmul.f32 %v890, %v1034
    %v1072 = vmul.f32 %v891, %v1039
    %v1073 = vmul.f32 %v892, %v1044
    %v1074 = vmul.f32 %v893, %v1049
    %v1075 = vmul.f32 %v894, %v1054
    %v1076 = vmul.f32 %v895, %v1059
    %v1077 = vmul.f32 %v896, %v1064
    %v1078 = vmul.f32 %v897, %v1069
    %v1079 = vsel %vm76, %v1071, 0.0
    %v1080 = vsel %vm76, %v1072, 0.0
    %v1081 = vadd.f32 %v1079, %v1080
    %v1082 = vsel %vm76, %v1073, 0.0
    %v1083 = vadd.f32 %v1081, %v1082
    %v1084 = vsel %vm76, %v1074, 0.0
    %v1085 = vadd.f32 %v1083, %v1084
    %v1086 = vsel %vm76, %v1075, 0.0
    %v1087 = vadd.f32 %v1085, %v1086
    %v1088 = vsel %vm76, %v1076, 0.0
    %v1089 = vadd.f32 %v1087, %v1088
    %v1090 = vsel %vm76, %v1077, 0.0
    %v1091 = vadd.f32 %v1089, %v1090
    %v1092 = vsel %vm76, %v1078, 0.0
    %v1093 = vadd.f32 %v1091, %v1092
    %v1094 = vrot.slane %v1093, 4
    %v1095 = vadd.f32 %v1093, %v1094
    %v1096 = vrot.slane %v1095, 2
    %v1097 = vadd.f32 %v1095, %v1096
    %v1098 = vrot.slane %v1097, 1
    %v1099 = vadd.f32 %v1097, %v1098
    %v1100 = vmul.f32 %v890, %v1099
    %v1101 = vmul.f32 %v891, %v1099
    %v1102 = vmul.f32 %v892, %v1099
    %v1103 = vmul.f32 %v893, %v1099
    %v1104 = vmul.f32 %v894, %v1099
    %v1105 = vmul.f32 %v895, %v1099
    %v1106 = vmul.f32 %v896, %v1099
    %v1107 = vmul.f32 %v897, %v1099
    %v1108 = vsel %vm76, %v1100, 0.0
    %1109 = vadd.xlane.f32.xlu0 %v1108
    %v1110 = vpop.xlane.xlu0 %1109
    %v1111 = vsel %vm76, %v1101, 0.0
    %1112 = vadd.xlane.f32.xlu0 %v1111
    %v1113 = vpop.xlane.xlu0 %1112
    %v1114 = vsel %vm76, %v1102, 0.0
    %1115 = vadd.xlane.f32.xlu0 %v1114
    %v1116 = vpop.xlane.xlu0 %1115
    %v1117 = vsel %vm76, %v1103, 0.0
    %1118 = vadd.xlane.f32.xlu0 %v1117
    %v1119 = vpop.xlane.xlu0 %1118
    %v1120 = vsel %vm76, %v1104, 0.0
    %1121 = vadd.xlane.f32.xlu0 %v1120
    %v1122 = vpop.xlane.xlu0 %1121
    %v1123 = vsel %vm76, %v1105, 0.0
    %1124 = vadd.xlane.f32.xlu0 %v1123
    %v1125 = vpop.xlane.xlu0 %1124
    %v1126 = vsel %vm76, %v1106, 0.0
    %1127 = vadd.xlane.f32.xlu0 %v1126
    %v1128 = vpop.xlane.xlu0 %1127
    %v1129 = vsel %vm76, %v1107, 0.0
    %1130 = vadd.xlane.f32.xlu0 %v1129
    %v1131 = vpop.xlane.xlu0 %1130
    %v1132 = vrcp.pop %v1110
    %v1133 = vmul.f32 %v1016, %v1132
    %v1134 = vrcp.pop %v1113
    %v1135 = vmul.f32 %v1018, %v1134
    %v1136 = vrcp.pop %v1116
    %v1137 = vmul.f32 %v1020, %v1136
    %v1138 = vrcp.pop %v1119
    %v1139 = vmul.f32 %v1022, %v1138
    %v1140 = vrcp.pop %v1122
    %v1141 = vmul.f32 %v1024, %v1140
    %v1142 = vrcp.pop %v1125
    %v1143 = vmul.f32 %v1026, %v1142
    %v1144 = vrcp.pop %v1128
    %v1145 = vmul.f32 %v1028, %v1144
    %v1146 = vrcp.pop %v1131
    %v1147 = vmul.f32 %v1030, %v1146
    %1149 = vset.pattern.permute.xlu0 0
    %1150 = vperm.xlu0 %1149, %v1133
    %v1151 = vpop.permute.xlu0 %1150
    %1154 = vset.pattern.permute.xlu0 0
    %1155 = vperm.xlu0 %1154, %v1135
    %v1156 = vpop.permute.xlu0 %1155
    %1159 = vset.pattern.permute.xlu0 0
    %1160 = vperm.xlu0 %1159, %v1137
    %v1161 = vpop.permute.xlu0 %1160
    %1164 = vset.pattern.permute.xlu0 0
    %1165 = vperm.xlu0 %1164, %v1139
    %v1166 = vpop.permute.xlu0 %1165
    %1169 = vset.pattern.permute.xlu0 0
    %1170 = vperm.xlu0 %1169, %v1141
    %v1171 = vpop.permute.xlu0 %1170
    %1174 = vset.pattern.permute.xlu0 0
    %1175 = vperm.xlu0 %1174, %v1143
    %v1176 = vpop.permute.xlu0 %1175
    %1179 = vset.pattern.permute.xlu0 0
    %1180 = vperm.xlu0 %1179, %v1145
    %v1181 = vpop.permute.xlu0 %1180
    %1184 = vset.pattern.permute.xlu0 0
    %1185 = vperm.xlu0 %1184, %v1147
    %v1186 = vpop.permute.xlu0 %1185
    %v1188 = vmul.f32 %v181, %v1151
    %v1189 = vmul.f32 %v261, %v1156
    %v1190 = vmul.f32 %v328, %v1161
    %v1191 = vmul.f32 %v395, %v1166
    %v1192 = vmul.f32 %v462, %v1171
    %v1193 = vmul.f32 %v529, %v1176
    %v1194 = vmul.f32 %v596, %v1181
    %v1195 = vmul.f32 %v663, %v1186
    %1204 = vrot.lane.b32.xlu0 %v1188, 32
    %v1205 = vpop.permute.xlu0 %1204
    %1206 = vrot.lane.b32.xlu0 %v1189, 32
    %v1207 = vpop.permute.xlu0 %1206
    %1208 = vrot.lane.b32.xlu0 %v1190, 32
    %v1209 = vpop.permute.xlu0 %1208
    %1210 = vrot.lane.b32.xlu0 %v1191, 32
    %v1211 = vpop.permute.xlu0 %1210
    %1212 = vrot.lane.b32.xlu0 %v1192, 32
    %v1213 = vpop.permute.xlu0 %1212
    %1214 = vrot.lane.b32.xlu0 %v1193, 32
    %v1215 = vpop.permute.xlu0 %1214
    %1216 = vrot.lane.b32.xlu0 %v1194, 32
    %v1217 = vpop.permute.xlu0 %1216
    %1218 = vrot.lane.b32.xlu0 %v1195, 32
    %v1219 = vpop.permute.xlu0 %1218
    %1228 = vst.msk [vmem:[%s9] sm:$0xff] %vm198, %v1205
    %1229 = vst.msk [vmem:[%s9 + $0x8] sm:$0xff] %vm198, %v1207
    %1230 = vst.msk [vmem:[%s9 + $0x10] sm:$0xff] %vm198, %v1209
    %1231 = vst.msk [vmem:[%s9 + $0x18] sm:$0xff] %vm198, %v1211
    %1232 = vst.msk [vmem:[%s9 + $0x20] sm:$0xff] %vm198, %v1213
    %1233 = vst.msk [vmem:[%s9 + $0x28] sm:$0xff] %vm198, %v1215
    %1234 = vst.msk [vmem:[%s9 + $0x30] sm:$0xff] %vm198, %v1217
    %1235 = vst.msk [vmem:[%s9 + $0x38] sm:$0xff] %vm198, %v1219
    // Predicated region
    $region38: #{tpu_custom_call.1} parent=1 // pred_check
      _
    $region39: #{tpu_custom_call.1} parent=1 // pred_check_branch
      %1237 = sbr.rel (0) target = $region41
    $region40: #{tpu_custom_call.1} parent=1 // pred_region
      _
    $region41: #{tpu_custom_call.1} parent=1 // pred_fallthru
      _
    // Predicated region
    $region42: #{tpu_custom_call.1} parent=1 // pred_check
      _
    $region43: #{tpu_custom_call.1} parent=1 // pred_check_branch
      %1239 = sbr.rel (0) target = $region45
    $region44: #{tpu_custom_call.1} parent=1 // pred_region
      %s1241 = ssub.s32 128, 128
      %1242 = vsyncadd [#allocation4], %s1241
      %s1244 = sshll.u32 [#allocation3], 4
      %s1245 = int_to_ptr.vmem [resolvable:$true] %s1244
      %1247 = dma.vmem_to_hbm [thread:$0]  %s1245, 128, %s10, [#allocation4]
    $region45: #{tpu_custom_call.1} parent=1 // pred_fallthru
      _
    // Predicated region
    $region46: #{tpu_custom_call.1} parent=1 // pred_check
      _
    $region47: #{tpu_custom_call.1} parent=1 // pred_check_branch
      %1249 = sbr.rel (0) target = $region49
    $region48: #{tpu_custom_call.1} parent=1 // pred_region
      %s1251 = ssub.s32 128, 128
      %1252 = vsyncadd [#allocation6], %s1251
      %s1254 = sshll.u32 [#allocation5], 4
      %s1255 = int_to_ptr.vmem [resolvable:$true] %s1254
      %1257 = dma.vmem_to_hbm [thread:$0]  %s1255, 128, %s11, [#allocation6]
    $region49: #{tpu_custom_call.1} parent=1 // pred_fallthru
      _
    // Predicated region
    $region50: #{tpu_custom_call.1} parent=1 // pred_check
      _
    $region51: #{tpu_custom_call.1} parent=1 // pred_check_branch
      %1259 = sbr.rel (0) target = $region53
    $region52: #{tpu_custom_call.1} parent=1 // pred_region
      _
    $region53: #{tpu_custom_call.1} parent=1 // pred_fallthru
      _
    // Predicated region
    $region54: #{tpu_custom_call.1} parent=1 // pred_check
      _
    $region55: #{tpu_custom_call.1} parent=1 // pred_check_branch
      %1261 = sbr.rel (0) target = $region57
    $region56: #{tpu_custom_call.1} parent=1 // pred_region
      %1262 = dma.done [#allocation4], 128
    $region57: #{tpu_custom_call.1} parent=1 // pred_fallthru
      _
    // Predicated region
    $region58: #{tpu_custom_call.1} parent=1 // pred_check
      _
    $region59: #{tpu_custom_call.1} parent=1 // pred_check_branch
      %1264 = sbr.rel (0) target = $region61
    $region60: #{tpu_custom_call.1} parent=1 // pred_region
      %1265 = dma.done [#allocation6], 128
    $region61: #{tpu_custom_call.1} parent=1 // pred_fallthru
      _
    %1266 = vsyncpa [#allocation4], 1
    %1267 = vsyncpa [#allocation6], 1

</llo_original>
